<compile_context>
chip_gen: v5e
topology: v5e:2x2
jax: 0.10.0
libtpu: 0.0.40
codegen_flags: <defaults>
</compile_context>

<pallas_src>
import functools

import jax
import jax.numpy as jnp
from jax import lax
from jax.experimental import pallas as pl
from jax.experimental.pallas import tpu as pltpu


# ----------------------------------------------------------------------------
# helpers
# ----------------------------------------------------------------------------
def _round_up(x, m):
    return ((x + m - 1) // m) * m


def _row_tile(n):
    """Largest row tile <= 256 that divides n (n is a multiple of 8)."""
    for t in (256, 128, 64, 32, 16, 8):
        if n % t == 0:
            return t
    return n


def _time_chunk(t):
    """Largest divisor of t that is <= 16 (inner unrolled loop length)."""
    for d in range(min(t, 16), 0, -1):
        if t % d == 0:
            return d
    return 1


# ----------------------------------------------------------------------------
# Pallas kernels
# ----------------------------------------------------------------------------
def matmul_bias_kernel(x_ref, w_ref, b_ref, o_ref):
    """(tm, K) @ (K, Mp) + (1, Mp) -> (tm, Mp).  Mp is a multiple of 128."""
    o_ref[...] = (
        jnp.dot(x_ref[...], w_ref[...], preferred_element_type=jnp.float32)
        + b_ref[...]
    )


def gru_recurrent_kernel(gx_ref, whh_ref, bhh_ref, out_ref, hT_ref, h_scratch):
    """Recurrent part of one GRU layer over one time chunk.

    gx_ref  : (Tc, Bp, 3Hp)  precomputed x@Wih + bih (gate-blocked, padded)
    whh_ref : (Hp, 3Hp)      hidden->hidden weights (resident across grid)
    bhh_ref : (1, 3Hp)       hidden bias
    out_ref : (Tc, Bp, Hp)   per-step hidden states for this chunk
    hT_ref  : (Bp, Hp)       final hidden state (written on last chunk only)
    h_scratch : (Bp, Hp)     VMEM-carried hidden state across grid steps
    """
    c = pl.program_id(0)
    Tc = gx_ref.shape[0]
    Hp = whh_ref.shape[0]

    @pl.when(c == 0)
    def _():
        h_scratch[...] = jnp.zeros_like(h_scratch)

    whh = whh_ref[...]
    bhh = bhh_ref[...]

    def step(i, h):
        gx = gx_ref[i]                                            # (Bp, 3Hp)
        gh = jnp.dot(h, whh, preferred_element_type=jnp.float32) + bhh
        r = jax.nn.sigmoid(gx[:, 0:Hp] + gh[:, 0:Hp])
        z = jax.nn.sigmoid(gx[:, Hp:2 * Hp] + gh[:, Hp:2 * Hp])
        n = jnp.tanh(gx[:, 2 * Hp:3 * Hp] + r * gh[:, 2 * Hp:3 * Hp])
        h_new = (1.0 - z) * n + z * h
        out_ref[i] = h_new
        return h_new

    h_final = lax.fori_loop(0, Tc, step, h_scratch[...], unroll=True)
    h_scratch[...] = h_final

    @pl.when(c == pl.num_programs(0) - 1)
    def _():
        hT_ref[...] = h_final


# ----------------------------------------------------------------------------
# Pallas wrappers
# ----------------------------------------------------------------------------
def matmul_bias(x, w, b):
    """x: (N, K) f32, w: (K, Mp) f32 (Mp % 128 == 0), b: (1, Mp) f32."""
    n, k = x.shape
    mp = w.shape[1]
    np_ = _round_up(n, 8)
    if np_ != n:
        x = jnp.pad(x, ((0, np_ - n), (0, 0)))
    tm = _row_tile(np_)
    out = pl.pallas_call(
        matmul_bias_kernel,
        grid=(np_ // tm,),
        in_specs=[
            pl.BlockSpec((tm, k), lambda i: (i, 0)),
            pl.BlockSpec((k, mp), lambda i: (0, 0)),
            pl.BlockSpec((1, mp), lambda i: (0, 0)),
        ],
        out_specs=pl.BlockSpec((tm, mp), lambda i: (i, 0)),
        out_shape=jax.ShapeDtypeStruct((np_, mp), jnp.float32),
        compiler_params=pltpu.CompilerParams(
            dimension_semantics=("parallel",)),
    )(x, w, b)
    return out[:n] if np_ != n else out


def gru_recurrence(gx, whh_p, bhh_p):
    """gx: (T, Bp, 3Hp), whh_p: (Hp, 3Hp), bhh_p: (1, 3Hp)."""
    t, bp, g = gx.shape
    hp = whh_p.shape[0]
    tc = _time_chunk(t)
    out, h_final = pl.pallas_call(
        gru_recurrent_kernel,
        grid=(t // tc,),
        in_specs=[
            pl.BlockSpec((tc, bp, g), lambda c: (c, 0, 0)),
            pl.BlockSpec((hp, g), lambda c: (0, 0)),
            pl.BlockSpec((1, g), lambda c: (0, 0)),
        ],
        out_specs=(
            pl.BlockSpec((tc, bp, hp), lambda c: (c, 0, 0)),
            pl.BlockSpec((bp, hp), lambda c: (0, 0)),
        ),
        out_shape=(
            jax.ShapeDtypeStruct((t, bp, hp), jnp.float32),
            jax.ShapeDtypeStruct((bp, hp), jnp.float32),
        ),
        scratch_shapes=[pltpu.VMEM((bp, hp), jnp.float32)],
        compiler_params=pltpu.CompilerParams(
            dimension_semantics=("arbitrary",)),
    )(gx, whh_p, bhh_p)
    return out, h_final


# ----------------------------------------------------------------------------
# Parameters (PyTorch layout) + padding to TPU-friendly layout
# ----------------------------------------------------------------------------
def init_params(key, input_size, output_size, hidden_dim, num_layers):
    """PyTorch-shaped params, uniform(-1/sqrt(H), 1/sqrt(H))."""
    k = 1.0 / jnp.sqrt(jnp.float32(hidden_dim))
    params = {"gru": [], "fc": None}
    for layer in range(num_layers):
        in_dim = input_size if layer == 0 else hidden_dim
        key, k1, k2, k3, k4 = jax.random.split(key, 5)
        params["gru"].append({
            "w_ih": jax.random.uniform(k1, (3 * hidden_dim, in_dim),
                                       jnp.float32, -k, k),
            "w_hh": jax.random.uniform(k2, (3 * hidden_dim, hidden_dim),
                                       jnp.float32, -k, k),
            "b_ih": jax.random.uniform(k3, (3 * hidden_dim,),
                                       jnp.float32, -k, k),
            "b_hh": jax.random.uniform(k4, (3 * hidden_dim,),
                                       jnp.float32, -k, k),
        })
    key, k1, k2 = jax.random.split(key, 3)
    params["fc"] = {
        "w": jax.random.uniform(k1, (output_size, hidden_dim),
                                jnp.float32, -k, k),
        "b": jax.random.uniform(k2, (output_size,), jnp.float32, -k, k),
    }
    return params


def prepare_params(params, hidden_dim):
    """Transpose + zero-pad weights to lane-aligned, gate-blocked layout.

    Each gate g occupies columns [g*Hp, g*Hp + H) of a 3*Hp-wide matrix
    (Hp = round_up(H, 128)); all padding is zero so results are exact.
    """
    h = hidden_dim
    hp = _round_up(h, 128)
    prepared = {"gru": []}
    for li, lp in enumerate(params["gru"]):
        in_dim = lp["w_ih"].shape[1]
        in_dim_p = in_dim if li == 0 else hp
        wih = jnp.zeros((in_dim_p, 3 * hp), jnp.float32)
        whh = jnp.zeros((hp, 3 * hp), jnp.float32)
        bih = jnp.zeros((1, 3 * hp), jnp.float32)
        bhh = jnp.zeros((1, 3 * hp), jnp.float32)
        wih_t = lp["w_ih"].T.astype(jnp.float32)       # (in_dim, 3H)
        whh_t = lp["w_hh"].T.astype(jnp.float32)       # (H, 3H)
        for g in range(3):
            wih = wih.at[:in_dim, g * hp:g * hp + h].set(
                wih_t[:, g * h:(g + 1) * h])
            whh = whh.at[:h, g * hp:g * hp + h].set(
                whh_t[:, g * h:(g + 1) * h])
            bih = bih.at[:, g * hp:g * hp + h].set(
                lp["b_ih"][g * h:(g + 1) * h][None, :].astype(jnp.float32))
            bhh = bhh.at[:, g * hp:g * hp + h].set(
                lp["b_hh"][g * h:(g + 1) * h][None, :].astype(jnp.float32))
        prepared["gru"].append(
            {"w_ih": wih, "w_hh": whh, "b_ih": bih, "b_hh": bhh})

    o = params["fc"]["w"].shape[0]
    op = _round_up(o, 128)
    wfc = jnp.zeros((hp, op), jnp.float32).at[:h, :o].set(
        params["fc"]["w"].T.astype(jnp.float32))
    bfc = jnp.zeros((1, op), jnp.float32).at[:, :o].set(
        params["fc"]["b"].astype(jnp.float32)[None, :])
    prepared["fc"] = {"w": wfc, "b": bfc}
    return prepared


# ----------------------------------------------------------------------------
# Forward pass (matches Model.forward)
# ----------------------------------------------------------------------------
@functools.partial(jax.jit, static_argnums=(2, 3))
def model_forward(x, pparams, hidden_dim, output_size):
    """x: (B, T, input_size) batch_first.  Returns (out, hidden) like PyTorch:
    out (B*T, output_size), hidden (num_layers, B, hidden_dim)."""
    b, t, _ = x.shape
    h = hidden_dim
    bp = _round_up(b, 8)

    # time-major + batch pad (padded batch rows evolve independently, discarded)
    x_tm = jnp.transpose(x.astype(jnp.float32), (1, 0, 2))      # (T, B, I)
    x_tm = jnp.pad(x_tm, ((0, 0), (0, bp - b), (0, 0)))         # (T, Bp, I)

    layer_in = x_tm
    hiddens = []
    for lp in pparams["gru"]:
        in_dim = layer_in.shape[-1]
        g = lp["w_ih"].shape[1]                                  # 3*Hp
        # hoisted input projection: one big MXU matmul over all timesteps
        gx = matmul_bias(layer_in.reshape(t * bp, in_dim),
                         lp["w_ih"], lp["b_ih"])
        gx = gx.reshape(t, bp, g)
        layer_out, h_final = gru_recurrence(gx, lp["w_hh"], lp["b_hh"])
        hiddens.append(h_final[:b, :h])
        layer_in = layer_out                                     # (T, Bp, Hp)

    hidden = jnp.stack(hiddens, axis=0)                          # (L, B, H)

    # PyTorch: out.contiguous().view(-1, H) flattens batch-major
    out_bth = jnp.transpose(layer_in, (1, 0, 2))[:b]             # (B, T, Hp)
    out_flat = out_bth.reshape(b * t, -1)                        # (B*T, Hp)
    out = matmul_bias(out_flat, pparams["fc"]["w"], pparams["fc"]["b"])
    return out[:, :output_size], hidden


# ----------------------------------------------------------------------------
# Pure-JAX reference (for correctness check)
# ----------------------------------------------------------------------------
def gru_reference(x, params):
    b = x.shape[0]
    hi = lax.Precision.HIGHEST
    layer_in = x.astype(jnp.float32)
    hiddens = []
    for lp in params["gru"]:
        hdim = lp["w_hh"].shape[1]

        def step(hc, x_t, lp=lp, hdim=hdim):
            gx = jnp.dot(x_t, lp["w_ih"].T, precision=hi) + lp["b_ih"]
            gh = jnp.dot(hc, lp["w_hh"].T, precision=hi) + lp["b_hh"]
            r = jax.nn.sigmoid(gx[:, :hdim] + gh[:, :hdim])
            z = jax.nn.sigmoid(gx[:, hdim:2 * hdim] + gh[:, hdim:2 * hdim])
            n = jnp.tanh(gx[:, 2 * hdim:] + r * gh[:, 2 * hdim:])
            h_new = (1.0 - z) * n + z * hc
            return h_new, h_new

        h0 = jnp.zeros((b, hdim), jnp.float32)
        h_final, outs = lax.scan(step, h0, jnp.transpose(layer_in, (1, 0, 2)))
        layer_in = jnp.transpose(outs, (1, 0, 2))
        hiddens.append(h_final)
    hidden = jnp.stack(hiddens, axis=0)
    hdim = layer_in.shape[-1]
    out = (jnp.dot(layer_in.reshape(-1, hdim), params["fc"]["w"].T,
                   precision=hi) + params["fc"]["b"])
    return out, hidden


# ----------------------------------------------------------------------------
# main
# ----------------------------------------------------------------------------
if __name__ == "__main__":
    batch, seq = 2, 8
    input_size, hidden_dim, output_size, num_layers = 4, 32, 4, 2

    key = jax.random.PRNGKey(0)
    key, pkey, xkey = jax.random.split(key, 3)
    params = init_params(pkey, input_size, output_size, hidden_dim, num_layers)
    x = jax.random.normal(xkey, (batch, seq, input_size), dtype=jnp.float32)

    pparams = prepare_params(params, hidden_dim)
    out, hidden = model_forward(x, pparams, hidden_dim, output_size)
    jax.block_until_ready((out, hidden))

    assert out.shape == (batch * seq, output_size)
    assert hidden.shape == (num_layers, batch, hidden_dim)

    out_ref, hidden_ref = gru_reference(x, params)
    err_out = float(jnp.max(jnp.abs(out - out_ref)))
    err_hid = float(jnp.max(jnp.abs(hidden - hidden_ref)))
    assert err_out < 5e-3 and err_hid < 5e-3, (err_out, err_hid)

    print("KERNEL_OK")
</pallas_src>

<mosaic_0001>
module attributes {stable_mosaic.version = 11 : i64} {
  func.func @gru_recurrent_kernel(%arg0: i32, %arg1: memref<8x8x384xf32, #tpu.memory_space<vmem>>, %arg2: memref<128x384xf32, #tpu.memory_space<vmem>>, %arg3: memref<1x384xf32, #tpu.memory_space<vmem>>, %arg4: memref<8x8x128xf32, #tpu.memory_space<vmem>>, %arg5: memref<8x128xf32, #tpu.memory_space<vmem>>, %arg6: memref<8x128xf32, #tpu.memory_space<vmem>>) attributes {dimension_semantics = [#tpu.dimension_semantics<arbitrary>], iteration_bounds = array<i64: 1>, scalar_prefetch = 0 : i64, scratch_operands = 1 : i64, tpu.core_type = #tpu.core_type<tc>, window_params = [{transform_indices = @transform_0, window_bounds = array<i64: 8, 8, 384>}, {pipeline_mode = #tpu.pipeline_mode<synchronous>, transform_indices = @transform_1, window_bounds = array<i64: 128, 384>}, {pipeline_mode = #tpu.pipeline_mode<synchronous>, transform_indices = @transform_2, window_bounds = array<i64: 1, 384>}, {transform_indices = @transform_3, window_bounds = array<i64: 8, 8, 128>}, {pipeline_mode = #tpu.pipeline_mode<synchronous>, transform_indices = @transform_4, window_bounds = array<i64: 8, 128>}]} {
    %c0_i32 = arith.constant 0 : i32
    %0 = arith.cmpi eq, %arg0, %c0_i32 : i32
    %1 = arith.extui %0 : i1 to i32
    %c0_i32_0 = arith.constant 0 : i32
    %2 = arith.cmpi ne, %1, %c0_i32_0 : i32
    scf.if %2 {
      %cst_74 = arith.constant 0.000000e+00 : f32
      %298 = vector.broadcast %cst_74 : f32 to vector<8x128xf32>
      %c0_75 = arith.constant 0 : index
      %c0_76 = arith.constant 0 : index
      %299 = vector.load %arg6[%c0_75, %c0_76] : memref<8x128xf32, #tpu.memory_space<vmem>>, vector<8x128xf32>
      tpu.vector_store %arg6[%c0_75, %c0_76], %298 {strides = array<i32>} : memref<8x128xf32, #tpu.memory_space<vmem>>, vector<8x128xf32>,
    } else {
    }
    %c0 = arith.constant 0 : index
    %c0_1 = arith.constant 0 : index
    %3 = vector.load %arg2[%c0, %c0_1] : memref<128x384xf32, #tpu.memory_space<vmem>>, vector<128x384xf32>
    %c0_2 = arith.constant 0 : index
    %c0_3 = arith.constant 0 : index
    %4 = vector.load %arg3[%c0_2, %c0_3] : memref<1x384xf32, #tpu.memory_space<vmem>>, vector<1x384xf32>
    %c0_4 = arith.constant 0 : index
    %c0_5 = arith.constant 0 : index
    %5 = vector.load %arg6[%c0_4, %c0_5] : memref<8x128xf32, #tpu.memory_space<vmem>>, vector<8x128xf32>
    %c0_i32_6 = arith.constant 0 : i32
    %6 = arith.index_cast %c0_i32_6 : i32 to index
    %c0_7 = arith.constant 0 : index
    %c0_8 = arith.constant 0 : index
    %7 = vector.load %arg1[%6, %c0_7, %c0_8] : memref<8x8x384xf32, #tpu.memory_space<vmem>>, vector<1x8x384xf32>
    %8 = vector.shape_cast %7 : vector<1x8x384xf32> to vector<8x384xf32>
    %cst = arith.constant dense<0.000000e+00> : vector<8x384xf32>
    %9 = tpu.matmul %5, %3, %cst {dimension_numbers = #tpu.dot_dimension_numbers<[1], [0], [0], [1], [0, 0, 1, 1], [], []>} : vector<8x128xf32>, vector<128x384xf32>, vector<8x384xf32> -> vector<8x384xf32>
    %10 = vector.broadcast %4 : vector<1x384xf32> to vector<8x384xf32>
    %11 = arith.addf %9, %10 : vector<8x384xf32>
    %12 = vector.extract_strided_slice %8 {offsets = [0, 0], sizes = [8, 128], strides = [1, 1]} : vector<8x384xf32> to vector<8x128xf32>
    %13 = vector.extract_strided_slice %11 {offsets = [0, 0], sizes = [8, 128], strides = [1, 1]} : vector<8x384xf32> to vector<8x128xf32>
    %14 = arith.addf %12, %13 : vector<8x128xf32>
    %15 = arith.negf %14 : vector<8x128xf32>
    %16 = math.exp %15 : vector<8x128xf32>
    %cst_9 = arith.constant 1.000000e+00 : f32
    %17 = vector.broadcast %cst_9 : f32 to vector<8x128xf32>
    %18 = arith.addf %17, %16 : vector<8x128xf32>
    %19 = arith.divf %17, %18 : vector<8x128xf32>
    %20 = vector.extract_strided_slice %8 {offsets = [0, 128], sizes = [8, 128], strides = [1, 1]} : vector<8x384xf32> to vector<8x128xf32>
    %21 = vector.extract_strided_slice %11 {offsets = [0, 128], sizes = [8, 128], strides = [1, 1]} : vector<8x384xf32> to vector<8x128xf32>
    %22 = arith.addf %20, %21 : vector<8x128xf32>
    %23 = arith.negf %22 : vector<8x128xf32>
    %24 = math.exp %23 : vector<8x128xf32>
    %cst_10 = arith.constant 1.000000e+00 : f32
    %25 = vector.broadcast %cst_10 : f32 to vector<8x128xf32>
    %26 = arith.addf %25, %24 : vector<8x128xf32>
    %27 = arith.divf %25, %26 : vector<8x128xf32>
    %28 = vector.extract_strided_slice %8 {offsets = [0, 256], sizes = [8, 128], strides = [1, 1]} : vector<8x384xf32> to vector<8x128xf32>
    %29 = vector.extract_strided_slice %11 {offsets = [0, 256], sizes = [8, 128], strides = [1, 1]} : vector<8x384xf32> to vector<8x128xf32>
    %30 = arith.mulf %19, %29 : vector<8x128xf32>
    %31 = arith.addf %28, %30 : vector<8x128xf32>
    %32 = math.tanh %31 : vector<8x128xf32>
    %cst_11 = arith.constant 1.000000e+00 : f32
    %33 = vector.broadcast %cst_11 : f32 to vector<8x128xf32>
    %34 = arith.subf %33, %27 : vector<8x128xf32>
    %35 = arith.mulf %34, %32 : vector<8x128xf32>
    %36 = arith.mulf %27, %5 : vector<8x128xf32>
    %37 = arith.addf %35, %36 : vector<8x128xf32>
    %38 = arith.index_cast %c0_i32_6 : i32 to index
    %c0_12 = arith.constant 0 : index
    %c0_13 = arith.constant 0 : index
    %39 = vector.load %arg4[%38, %c0_12, %c0_13] : memref<8x8x128xf32, #tpu.memory_space<vmem>>, vector<1x8x128xf32>
    %40 = vector.shape_cast %39 : vector<1x8x128xf32> to vector<8x128xf32>
    %41 = vector.shape_cast %37 : vector<8x128xf32> to vector<1x8x128xf32>
    tpu.vector_store %arg4[%38, %c0_12, %c0_13], %41 {strides = array<i32>} : memref<8x8x128xf32, #tpu.memory_space<vmem>>, vector<1x8x128xf32>,
    %c1_i32 = arith.constant 1 : i32
    %42 = arith.index_cast %c1_i32 : i32 to index
    %c0_14 = arith.constant 0 : index
    %c0_15 = arith.constant 0 : index
    %43 = vector.load %arg1[%42, %c0_14, %c0_15] : memref<8x8x384xf32, #tpu.memory_space<vmem>>, vector<1x8x384xf32>
    %44 = vector.shape_cast %43 : vector<1x8x384xf32> to vector<8x384xf32>
    %cst_16 = arith.constant dense<0.000000e+00> : vector<8x384xf32>
    %45 = tpu.matmul %37, %3, %cst_16 {dimension_numbers = #tpu.dot_dimension_numbers<[1], [0], [0], [1], [0, 0, 1, 1], [], []>} : vector<8x128xf32>, vector<128x384xf32>, vector<8x384xf32> -> vector<8x384xf32>
    %46 = vector.broadcast %4 : vector<1x384xf32> to vector<8x384xf32>
    %47 = arith.addf %45, %46 : vector<8x384xf32>
    %48 = vector.extract_strided_slice %44 {offsets = [0, 0], sizes = [8, 128], strides = [1, 1]} : vector<8x384xf32> to vector<8x128xf32>
    %49 = vector.extract_strided_slice %47 {offsets = [0, 0], sizes = [8, 128], strides = [1, 1]} : vector<8x384xf32> to vector<8x128xf32>
    %50 = arith.addf %48, %49 : vector<8x128xf32>
    %51 = arith.negf %50 : vector<8x128xf32>
    %52 = math.exp %51 : vector<8x128xf32>
    %cst_17 = arith.constant 1.000000e+00 : f32
    %53 = vector.broadcast %cst_17 : f32 to vector<8x128xf32>
    %54 = arith.addf %53, %52 : vector<8x128xf32>
    %55 = arith.divf %53, %54 : vector<8x128xf32>
    %56 = vector.extract_strided_slice %44 {offsets = [0, 128], sizes = [8, 128], strides = [1, 1]} : vector<8x384xf32> to vector<8x128xf32>
    %57 = vector.extract_strided_slice %47 {offsets = [0, 128], sizes = [8, 128], strides = [1, 1]} : vector<8x384xf32> to vector<8x128xf32>
    %58 = arith.addf %56, %57 : vector<8x128xf32>
    %59 = arith.negf %58 : vector<8x128xf32>
    %60 = math.exp %59 : vector<8x128xf32>
    %cst_18 = arith.constant 1.000000e+00 : f32
    %61 = vector.broadcast %cst_18 : f32 to vector<8x128xf32>
    %62 = arith.addf %61, %60 : vector<8x128xf32>
    %63 = arith.divf %61, %62 : vector<8x128xf32>
    %64 = vector.extract_strided_slice %44 {offsets = [0, 256], sizes = [8, 128], strides = [1, 1]} : vector<8x384xf32> to vector<8x128xf32>
    %65 = vector.extract_strided_slice %47 {offsets = [0, 256], sizes = [8, 128], strides = [1, 1]} : vector<8x384xf32> to vector<8x128xf32>
    %66 = arith.mulf %55, %65 : vector<8x128xf32>
    %67 = arith.addf %64, %66 : vector<8x128xf32>
    %68 = math.tanh %67 : vector<8x128xf32>
    %cst_19 = arith.constant 1.000000e+00 : f32
    %69 = vector.broadcast %cst_19 : f32 to vector<8x128xf32>
    %70 = arith.subf %69, %63 : vector<8x128xf32>
    %71 = arith.mulf %70, %68 : vector<8x128xf32>
    %72 = arith.mulf %63, %37 : vector<8x128xf32>
    %73 = arith.addf %71, %72 : vector<8x128xf32>
    %74 = arith.index_cast %c1_i32 : i32 to index
    %c0_20 = arith.constant 0 : index
    %c0_21 = arith.constant 0 : index
    %75 = vector.load %arg4[%74, %c0_20, %c0_21] : memref<8x8x128xf32, #tpu.memory_space<vmem>>, vector<1x8x128xf32>
    %76 = vector.shape_cast %75 : vector<1x8x128xf32> to vector<8x128xf32>
    %77 = vector.shape_cast %73 : vector<8x128xf32> to vector<1x8x128xf32>
    tpu.vector_store %arg4[%74, %c0_20, %c0_21], %77 {strides = array<i32>} : memref<8x8x128xf32, #tpu.memory_space<vmem>>, vector<1x8x128xf32>,
    %c2_i32 = arith.constant 2 : i32
    %78 = arith.index_cast %c2_i32 : i32 to index
    %c0_22 = arith.constant 0 : index
    %c0_23 = arith.constant 0 : index
    %79 = vector.load %arg1[%78, %c0_22, %c0_23] : memref<8x8x384xf32, #tpu.memory_space<vmem>>, vector<1x8x384xf32>
    %80 = vector.shape_cast %79 : vector<1x8x384xf32> to vector<8x384xf32>
    %cst_24 = arith.constant dense<0.000000e+00> : vector<8x384xf32>
    %81 = tpu.matmul %73, %3, %cst_24 {dimension_numbers = #tpu.dot_dimension_numbers<[1], [0], [0], [1], [0, 0, 1, 1], [], []>} : vector<8x128xf32>, vector<128x384xf32>, vector<8x384xf32> -> vector<8x384xf32>
    %82 = vector.broadcast %4 : vector<1x384xf32> to vector<8x384xf32>
    %83 = arith.addf %81, %82 : vector<8x384xf32>
    %84 = vector.extract_strided_slice %80 {offsets = [0, 0], sizes = [8, 128], strides = [1, 1]} : vector<8x384xf32> to vector<8x128xf32>
    %85 = vector.extract_strided_slice %83 {offsets = [0, 0], sizes = [8, 128], strides = [1, 1]} : vector<8x384xf32> to vector<8x128xf32>
    %86 = arith.addf %84, %85 : vector<8x128xf32>
    %87 = arith.negf %86 : vector<8x128xf32>
    %88 = math.exp %87 : vector<8x128xf32>
    %cst_25 = arith.constant 1.000000e+00 : f32
    %89 = vector.broadcast %cst_25 : f32 to vector<8x128xf32>
    %90 = arith.addf %89, %88 : vector<8x128xf32>
    %91 = arith.divf %89, %90 : vector<8x128xf32>
    %92 = vector.extract_strided_slice %80 {offsets = [0, 128], sizes = [8, 128], strides = [1, 1]} : vector<8x384xf32> to vector<8x128xf32>
    %93 = vector.extract_strided_slice %83 {offsets = [0, 128], sizes = [8, 128], strides = [1, 1]} : vector<8x384xf32> to vector<8x128xf32>
    %94 = arith.addf %92, %93 : vector<8x128xf32>
    %95 = arith.negf %94 : vector<8x128xf32>
    %96 = math.exp %95 : vector<8x128xf32>
    %cst_26 = arith.constant 1.000000e+00 : f32
    %97 = vector.broadcast %cst_26 : f32 to vector<8x128xf32>
    %98 = arith.addf %97, %96 : vector<8x128xf32>
    %99 = arith.divf %97, %98 : vector<8x128xf32>
    %100 = vector.extract_strided_slice %80 {offsets = [0, 256], sizes = [8, 128], strides = [1, 1]} : vector<8x384xf32> to vector<8x128xf32>
    %101 = vector.extract_strided_slice %83 {offsets = [0, 256], sizes = [8, 128], strides = [1, 1]} : vector<8x384xf32> to vector<8x128xf32>
    %102 = arith.mulf %91, %101 : vector<8x128xf32>
    %103 = arith.addf %100, %102 : vector<8x128xf32>
    %104 = math.tanh %103 : vector<8x128xf32>
    %cst_27 = arith.constant 1.000000e+00 : f32
    %105 = vector.broadcast %cst_27 : f32 to vector<8x128xf32>
    %106 = arith.subf %105, %99 : vector<8x128xf32>
    %107 = arith.mulf %106, %104 : vector<8x128xf32>
    %108 = arith.mulf %99, %73 : vector<8x128xf32>
    %109 = arith.addf %107, %108 : vector<8x128xf32>
    %110 = arith.index_cast %c2_i32 : i32 to index
    %c0_28 = arith.constant 0 : index
    %c0_29 = arith.constant 0 : index
    %111 = vector.load %arg4[%110, %c0_28, %c0_29] : memref<8x8x128xf32, #tpu.memory_space<vmem>>, vector<1x8x128xf32>
    %112 = vector.shape_cast %111 : vector<1x8x128xf32> to vector<8x128xf32>
    %113 = vector.shape_cast %109 : vector<8x128xf32> to vector<1x8x128xf32>
    tpu.vector_store %arg4[%110, %c0_28, %c0_29], %113 {strides = array<i32>} : memref<8x8x128xf32, #tpu.memory_space<vmem>>, vector<1x8x128xf32>,
    %c3_i32 = arith.constant 3 : i32
    %114 = arith.index_cast %c3_i32 : i32 to index
    %c0_30 = arith.constant 0 : index
    %c0_31 = arith.constant 0 : index
    %115 = vector.load %arg1[%114, %c0_30, %c0_31] : memref<8x8x384xf32, #tpu.memory_space<vmem>>, vector<1x8x384xf32>
    %116 = vector.shape_cast %115 : vector<1x8x384xf32> to vector<8x384xf32>
    %cst_32 = arith.constant dense<0.000000e+00> : vector<8x384xf32>
    %117 = tpu.matmul %109, %3, %cst_32 {dimension_numbers = #tpu.dot_dimension_numbers<[1], [0], [0], [1], [0, 0, 1, 1], [], []>} : vector<8x128xf32>, vector<128x384xf32>, vector<8x384xf32> -> vector<8x384xf32>
    %118 = vector.broadcast %4 : vector<1x384xf32> to vector<8x384xf32>
    %119 = arith.addf %117, %118 : vector<8x384xf32>
    %120 = vector.extract_strided_slice %116 {offsets = [0, 0], sizes = [8, 128], strides = [1, 1]} : vector<8x384xf32> to vector<8x128xf32>
    %121 = vector.extract_strided_slice %119 {offsets = [0, 0], sizes = [8, 128], strides = [1, 1]} : vector<8x384xf32> to vector<8x128xf32>
    %122 = arith.addf %120, %121 : vector<8x128xf32>
    %123 = arith.negf %122 : vector<8x128xf32>
    %124 = math.exp %123 : vector<8x128xf32>
    %cst_33 = arith.constant 1.000000e+00 : f32
    %125 = vector.broadcast %cst_33 : f32 to vector<8x128xf32>
    %126 = arith.addf %125, %124 : vector<8x128xf32>
    %127 = arith.divf %125, %126 : vector<8x128xf32>
    %128 = vector.extract_strided_slice %116 {offsets = [0, 128], sizes = [8, 128], strides = [1, 1]} : vector<8x384xf32> to vector<8x128xf32>
    %129 = vector.extract_strided_slice %119 {offsets = [0, 128], sizes = [8, 128], strides = [1, 1]} : vector<8x384xf32> to vector<8x128xf32>
    %130 = arith.addf %128, %129 : vector<8x128xf32>
    %131 = arith.negf %130 : vector<8x128xf32>
    %132 = math.exp %131 : vector<8x128xf32>
    %cst_34 = arith.constant 1.000000e+00 : f32
    %133 = vector.broadcast %cst_34 : f32 to vector<8x128xf32>
    %134 = arith.addf %133, %132 : vector<8x128xf32>
    %135 = arith.divf %133, %134 : vector<8x128xf32>
    %136 = vector.extract_strided_slice %116 {offsets = [0, 256], sizes = [8, 128], strides = [1, 1]} : vector<8x384xf32> to vector<8x128xf32>
    %137 = vector.extract_strided_slice %119 {offsets = [0, 256], sizes = [8, 128], strides = [1, 1]} : vector<8x384xf32> to vector<8x128xf32>
    %138 = arith.mulf %127, %137 : vector<8x128xf32>
    %139 = arith.addf %136, %138 : vector<8x128xf32>
    %140 = math.tanh %139 : vector<8x128xf32>
    %cst_35 = arith.constant 1.000000e+00 : f32
    %141 = vector.broadcast %cst_35 : f32 to vector<8x128xf32>
    %142 = arith.subf %141, %135 : vector<8x128xf32>
    %143 = arith.mulf %142, %140 : vector<8x128xf32>
    %144 = arith.mulf %135, %109 : vector<8x128xf32>
    %145 = arith.addf %143, %144 : vector<8x128xf32>
    %146 = arith.index_cast %c3_i32 : i32 to index
    %c0_36 = arith.constant 0 : index
    %c0_37 = arith.constant 0 : index
    %147 = vector.load %arg4[%146, %c0_36, %c0_37] : memref<8x8x128xf32, #tpu.memory_space<vmem>>, vector<1x8x128xf32>
    %148 = vector.shape_cast %147 : vector<1x8x128xf32> to vector<8x128xf32>
    %149 = vector.shape_cast %145 : vector<8x128xf32> to vector<1x8x128xf32>
    tpu.vector_store %arg4[%146, %c0_36, %c0_37], %149 {strides = array<i32>} : memref<8x8x128xf32, #tpu.memory_space<vmem>>, vector<1x8x128xf32>,
    %c4_i32 = arith.constant 4 : i32
    %150 = arith.index_cast %c4_i32 : i32 to index
    %c0_38 = arith.constant 0 : index
    %c0_39 = arith.constant 0 : index
    %151 = vector.load %arg1[%150, %c0_38, %c0_39] : memref<8x8x384xf32, #tpu.memory_space<vmem>>, vector<1x8x384xf32>
    %152 = vector.shape_cast %151 : vector<1x8x384xf32> to vector<8x384xf32>
    %cst_40 = arith.constant dense<0.000000e+00> : vector<8x384xf32>
    %153 = tpu.matmul %145, %3, %cst_40 {dimension_numbers = #tpu.dot_dimension_numbers<[1], [0], [0], [1], [0, 0, 1, 1], [], []>} : vector<8x128xf32>, vector<128x384xf32>, vector<8x384xf32> -> vector<8x384xf32>
    %154 = vector.broadcast %4 : vector<1x384xf32> to vector<8x384xf32>
    %155 = arith.addf %153, %154 : vector<8x384xf32>
    %156 = vector.extract_strided_slice %152 {offsets = [0, 0], sizes = [8, 128], strides = [1, 1]} : vector<8x384xf32> to vector<8x128xf32>
    %157 = vector.extract_strided_slice %155 {offsets = [0, 0], sizes = [8, 128], strides = [1, 1]} : vector<8x384xf32> to vector<8x128xf32>
    %158 = arith.addf %156, %157 : vector<8x128xf32>
    %159 = arith.negf %158 : vector<8x128xf32>
    %160 = math.exp %159 : vector<8x128xf32>
    %cst_41 = arith.constant 1.000000e+00 : f32
    %161 = vector.broadcast %cst_41 : f32 to vector<8x128xf32>
    %162 = arith.addf %161, %160 : vector<8x128xf32>
    %163 = arith.divf %161, %162 : vector<8x128xf32>
    %164 = vector.extract_strided_slice %152 {offsets = [0, 128], sizes = [8, 128], strides = [1, 1]} : vector<8x384xf32> to vector<8x128xf32>
    %165 = vector.extract_strided_slice %155 {offsets = [0, 128], sizes = [8, 128], strides = [1, 1]} : vector<8x384xf32> to vector<8x128xf32>
    %166 = arith.addf %164, %165 : vector<8x128xf32>
    %167 = arith.negf %166 : vector<8x128xf32>
    %168 = math.exp %167 : vector<8x128xf32>
    %cst_42 = arith.constant 1.000000e+00 : f32
    %169 = vector.broadcast %cst_42 : f32 to vector<8x128xf32>
    %170 = arith.addf %169, %168 : vector<8x128xf32>
    %171 = arith.divf %169, %170 : vector<8x128xf32>
    %172 = vector.extract_strided_slice %152 {offsets = [0, 256], sizes = [8, 128], strides = [1, 1]} : vector<8x384xf32> to vector<8x128xf32>
    %173 = vector.extract_strided_slice %155 {offsets = [0, 256], sizes = [8, 128], strides = [1, 1]} : vector<8x384xf32> to vector<8x128xf32>
    %174 = arith.mulf %163, %173 : vector<8x128xf32>
    %175 = arith.addf %172, %174 : vector<8x128xf32>
    %176 = math.tanh %175 : vector<8x128xf32>
    %cst_43 = arith.constant 1.000000e+00 : f32
    %177 = vector.broadcast %cst_43 : f32 to vector<8x128xf32>
    %178 = arith.subf %177, %171 : vector<8x128xf32>
    %179 = arith.mulf %178, %176 : vector<8x128xf32>
    %180 = arith.mulf %171, %145 : vector<8x128xf32>
    %181 = arith.addf %179, %180 : vector<8x128xf32>
    %182 = arith.index_cast %c4_i32 : i32 to index
    %c0_44 = arith.constant 0 : index
    %c0_45 = arith.constant 0 : index
    %183 = vector.load %arg4[%182, %c0_44, %c0_45] : memref<8x8x128xf32, #tpu.memory_space<vmem>>, vector<1x8x128xf32>
    %184 = vector.shape_cast %183 : vector<1x8x128xf32> to vector<8x128xf32>
    %185 = vector.shape_cast %181 : vector<8x128xf32> to vector<1x8x128xf32>
    tpu.vector_store %arg4[%182, %c0_44, %c0_45], %185 {strides = array<i32>} : memref<8x8x128xf32, #tpu.memory_space<vmem>>, vector<1x8x128xf32>,
    %c5_i32 = arith.constant 5 : i32
    %186 = arith.index_cast %c5_i32 : i32 to index
    %c0_46 = arith.constant 0 : index
    %c0_47 = arith.constant 0 : index
    %187 = vector.load %arg1[%186, %c0_46, %c0_47] : memref<8x8x384xf32, #tpu.memory_space<vmem>>, vector<1x8x384xf32>
    %188 = vector.shape_cast %187 : vector<1x8x384xf32> to vector<8x384xf32>
    %cst_48 = arith.constant dense<0.000000e+00> : vector<8x384xf32>
    %189 = tpu.matmul %181, %3, %cst_48 {dimension_numbers = #tpu.dot_dimension_numbers<[1], [0], [0], [1], [0, 0, 1, 1], [], []>} : vector<8x128xf32>, vector<128x384xf32>, vector<8x384xf32> -> vector<8x384xf32>
    %190 = vector.broadcast %4 : vector<1x384xf32> to vector<8x384xf32>
    %191 = arith.addf %189, %190 : vector<8x384xf32>
    %192 = vector.extract_strided_slice %188 {offsets = [0, 0], sizes = [8, 128], strides = [1, 1]} : vector<8x384xf32> to vector<8x128xf32>
    %193 = vector.extract_strided_slice %191 {offsets = [0, 0], sizes = [8, 128], strides = [1, 1]} : vector<8x384xf32> to vector<8x128xf32>
    %194 = arith.addf %192, %193 : vector<8x128xf32>
    %195 = arith.negf %194 : vector<8x128xf32>
    %196 = math.exp %195 : vector<8x128xf32>
    %cst_49 = arith.constant 1.000000e+00 : f32
    %197 = vector.broadcast %cst_49 : f32 to vector<8x128xf32>
    %198 = arith.addf %197, %196 : vector<8x128xf32>
    %199 = arith.divf %197, %198 : vector<8x128xf32>
    %200 = vector.extract_strided_slice %188 {offsets = [0, 128], sizes = [8, 128], strides = [1, 1]} : vector<8x384xf32> to vector<8x128xf32>
    %201 = vector.extract_strided_slice %191 {offsets = [0, 128], sizes = [8, 128], strides = [1, 1]} : vector<8x384xf32> to vector<8x128xf32>
    %202 = arith.addf %200, %201 : vector<8x128xf32>
    %203 = arith.negf %202 : vector<8x128xf32>
    %204 = math.exp %203 : vector<8x128xf32>
    %cst_50 = arith.constant 1.000000e+00 : f32
    %205 = vector.broadcast %cst_50 : f32 to vector<8x128xf32>
    %206 = arith.addf %205, %204 : vector<8x128xf32>
    %207 = arith.divf %205, %206 : vector<8x128xf32>
    %208 = vector.extract_strided_slice %188 {offsets = [0, 256], sizes = [8, 128], strides = [1, 1]} : vector<8x384xf32> to vector<8x128xf32>
    %209 = vector.extract_strided_slice %191 {offsets = [0, 256], sizes = [8, 128], strides = [1, 1]} : vector<8x384xf32> to vector<8x128xf32>
    %210 = arith.mulf %199, %209 : vector<8x128xf32>
    %211 = arith.addf %208, %210 : vector<8x128xf32>
    %212 = math.tanh %211 : vector<8x128xf32>
    %cst_51 = arith.constant 1.000000e+00 : f32
    %213 = vector.broadcast %cst_51 : f32 to vector<8x128xf32>
    %214 = arith.subf %213, %207 : vector<8x128xf32>
    %215 = arith.mulf %214, %212 : vector<8x128xf32>
    %216 = arith.mulf %207, %181 : vector<8x128xf32>
    %217 = arith.addf %215, %216 : vector<8x128xf32>
    %218 = arith.index_cast %c5_i32 : i32 to index
    %c0_52 = arith.constant 0 : index
    %c0_53 = arith.constant 0 : index
    %219 = vector.load %arg4[%218, %c0_52, %c0_53] : memref<8x8x128xf32, #tpu.memory_space<vmem>>, vector<1x8x128xf32>
    %220 = vector.shape_cast %219 : vector<1x8x128xf32> to vector<8x128xf32>
    %221 = vector.shape_cast %217 : vector<8x128xf32> to vector<1x8x128xf32>
    tpu.vector_store %arg4[%218, %c0_52, %c0_53], %221 {strides = array<i32>} : memref<8x8x128xf32, #tpu.memory_space<vmem>>, vector<1x8x128xf32>,
    %c6_i32 = arith.constant 6 : i32
    %222 = arith.index_cast %c6_i32 : i32 to index
    %c0_54 = arith.constant 0 : index
    %c0_55 = arith.constant 0 : index
    %223 = vector.load %arg1[%222, %c0_54, %c0_55] : memref<8x8x384xf32, #tpu.memory_space<vmem>>, vector<1x8x384xf32>
    %224 = vector.shape_cast %223 : vector<1x8x384xf32> to vector<8x384xf32>
    %cst_56 = arith.constant dense<0.000000e+00> : vector<8x384xf32>
    %225 = tpu.matmul %217, %3, %cst_56 {dimension_numbers = #tpu.dot_dimension_numbers<[1], [0], [0], [1], [0, 0, 1, 1], [], []>} : vector<8x128xf32>, vector<128x384xf32>, vector<8x384xf32> -> vector<8x384xf32>
    %226 = vector.broadcast %4 : vector<1x384xf32> to vector<8x384xf32>
    %227 = arith.addf %225, %226 : vector<8x384xf32>
    %228 = vector.extract_strided_slice %224 {offsets = [0, 0], sizes = [8, 128], strides = [1, 1]} : vector<8x384xf32> to vector<8x128xf32>
    %229 = vector.extract_strided_slice %227 {offsets = [0, 0], sizes = [8, 128], strides = [1, 1]} : vector<8x384xf32> to vector<8x128xf32>
    %230 = arith.addf %228, %229 : vector<8x128xf32>
    %231 = arith.negf %230 : vector<8x128xf32>
    %232 = math.exp %231 : vector<8x128xf32>
    %cst_57 = arith.constant 1.000000e+00 : f32
    %233 = vector.broadcast %cst_57 : f32 to vector<8x128xf32>
    %234 = arith.addf %233, %232 : vector<8x128xf32>
    %235 = arith.divf %233, %234 : vector<8x128xf32>
    %236 = vector.extract_strided_slice %224 {offsets = [0, 128], sizes = [8, 128], strides = [1, 1]} : vector<8x384xf32> to vector<8x128xf32>
    %237 = vector.extract_strided_slice %227 {offsets = [0, 128], sizes = [8, 128], strides = [1, 1]} : vector<8x384xf32> to vector<8x128xf32>
    %238 = arith.addf %236, %237 : vector<8x128xf32>
    %239 = arith.negf %238 : vector<8x128xf32>
    %240 = math.exp %239 : vector<8x128xf32>
    %cst_58 = arith.constant 1.000000e+00 : f32
    %241 = vector.broadcast %cst_58 : f32 to vector<8x128xf32>
    %242 = arith.addf %241, %240 : vector<8x128xf32>
    %243 = arith.divf %241, %242 : vector<8x128xf32>
    %244 = vector.extract_strided_slice %224 {offsets = [0, 256], sizes = [8, 128], strides = [1, 1]} : vector<8x384xf32> to vector<8x128xf32>
    %245 = vector.extract_strided_slice %227 {offsets = [0, 256], sizes = [8, 128], strides = [1, 1]} : vector<8x384xf32> to vector<8x128xf32>
    %246 = arith.mulf %235, %245 : vector<8x128xf32>
    %247 = arith.addf %244, %246 : vector<8x128xf32>
    %248 = math.tanh %247 : vector<8x128xf32>
    %cst_59 = arith.constant 1.000000e+00 : f32
    %249 = vector.broadcast %cst_59 : f32 to vector<8x128xf32>
    %250 = arith.subf %249, %243 : vector<8x128xf32>
    %251 = arith.mulf %250, %248 : vector<8x128xf32>
    %252 = arith.mulf %243, %217 : vector<8x128xf32>
    %253 = arith.addf %251, %252 : vector<8x128xf32>
    %254 = arith.index_cast %c6_i32 : i32 to index
    %c0_60 = arith.constant 0 : index
    %c0_61 = arith.constant 0 : index
    %255 = vector.load %arg4[%254, %c0_60, %c0_61] : memref<8x8x128xf32, #tpu.memory_space<vmem>>, vector<1x8x128xf32>
    %256 = vector.shape_cast %255 : vector<1x8x128xf32> to vector<8x128xf32>
    %257 = vector.shape_cast %253 : vector<8x128xf32> to vector<1x8x128xf32>
    tpu.vector_store %arg4[%254, %c0_60, %c0_61], %257 {strides = array<i32>} : memref<8x8x128xf32, #tpu.memory_space<vmem>>, vector<1x8x128xf32>,
    %c7_i32 = arith.constant 7 : i32
    %258 = arith.index_cast %c7_i32 : i32 to index
    %c0_62 = arith.constant 0 : index
    %c0_63 = arith.constant 0 : index
    %259 = vector.load %arg1[%258, %c0_62, %c0_63] : memref<8x8x384xf32, #tpu.memory_space<vmem>>, vector<1x8x384xf32>
    %260 = vector.shape_cast %259 : vector<1x8x384xf32> to vector<8x384xf32>
    %cst_64 = arith.constant dense<0.000000e+00> : vector<8x384xf32>
    %261 = tpu.matmul %253, %3, %cst_64 {dimension_numbers = #tpu.dot_dimension_numbers<[1], [0], [0], [1], [0, 0, 1, 1], [], []>} : vector<8x128xf32>, vector<128x384xf32>, vector<8x384xf32> -> vector<8x384xf32>
    %262 = vector.broadcast %4 : vector<1x384xf32> to vector<8x384xf32>
    %263 = arith.addf %261, %262 : vector<8x384xf32>
    %264 = vector.extract_strided_slice %260 {offsets = [0, 0], sizes = [8, 128], strides = [1, 1]} : vector<8x384xf32> to vector<8x128xf32>
    %265 = vector.extract_strided_slice %263 {offsets = [0, 0], sizes = [8, 128], strides = [1, 1]} : vector<8x384xf32> to vector<8x128xf32>
    %266 = arith.addf %264, %265 : vector<8x128xf32>
    %267 = arith.negf %266 : vector<8x128xf32>
    %268 = math.exp %267 : vector<8x128xf32>
    %cst_65 = arith.constant 1.000000e+00 : f32
    %269 = vector.broadcast %cst_65 : f32 to vector<8x128xf32>
    %270 = arith.addf %269, %268 : vector<8x128xf32>
    %271 = arith.divf %269, %270 : vector<8x128xf32>
    %272 = vector.extract_strided_slice %260 {offsets = [0, 128], sizes = [8, 128], strides = [1, 1]} : vector<8x384xf32> to vector<8x128xf32>
    %273 = vector.extract_strided_slice %263 {offsets = [0, 128], sizes = [8, 128], strides = [1, 1]} : vector<8x384xf32> to vector<8x128xf32>
    %274 = arith.addf %272, %273 : vector<8x128xf32>
    %275 = arith.negf %274 : vector<8x128xf32>
    %276 = math.exp %275 : vector<8x128xf32>
    %cst_66 = arith.constant 1.000000e+00 : f32
    %277 = vector.broadcast %cst_66 : f32 to vector<8x128xf32>
    %278 = arith.addf %277, %276 : vector<8x128xf32>
    %279 = arith.divf %277, %278 : vector<8x128xf32>
    %280 = vector.extract_strided_slice %260 {offsets = [0, 256], sizes = [8, 128], strides = [1, 1]} : vector<8x384xf32> to vector<8x128xf32>
    %281 = vector.extract_strided_slice %263 {offsets = [0, 256], sizes = [8, 128], strides = [1, 1]} : vector<8x384xf32> to vector<8x128xf32>
    %282 = arith.mulf %271, %281 : vector<8x128xf32>
    %283 = arith.addf %280, %282 : vector<8x128xf32>
    %284 = math.tanh %283 : vector<8x128xf32>
    %cst_67 = arith.constant 1.000000e+00 : f32
    %285 = vector.broadcast %cst_67 : f32 to vector<8x128xf32>
    %286 = arith.subf %285, %279 : vector<8x128xf32>
    %287 = arith.mulf %286, %284 : vector<8x128xf32>
    %288 = arith.mulf %279, %253 : vector<8x128xf32>
    %289 = arith.addf %287, %288 : vector<8x128xf32>
    %290 = arith.index_cast %c7_i32 : i32 to index
    %c0_68 = arith.constant 0 : index
    %c0_69 = arith.constant 0 : index
    %291 = vector.load %arg4[%290, %c0_68, %c0_69] : memref<8x8x128xf32, #tpu.memory_space<vmem>>, vector<1x8x128xf32>
    %292 = vector.shape_cast %291 : vector<1x8x128xf32> to vector<8x128xf32>
    %293 = vector.shape_cast %289 : vector<8x128xf32> to vector<1x8x128xf32>
    tpu.vector_store %arg4[%290, %c0_68, %c0_69], %293 {strides = array<i32>} : memref<8x8x128xf32, #tpu.memory_space<vmem>>, vector<1x8x128xf32>,
    %c8_i32 = arith.constant 8 : i32
    %c0_70 = arith.constant 0 : index
    %c0_71 = arith.constant 0 : index
    %294 = vector.load %arg6[%c0_70, %c0_71] : memref<8x128xf32, #tpu.memory_space<vmem>>, vector<8x128xf32>
    tpu.vector_store %arg6[%c0_70, %c0_71], %289 {strides = array<i32>} : memref<8x128xf32, #tpu.memory_space<vmem>>, vector<8x128xf32>,
    %c0_i32_72 = arith.constant 0 : i32
    %295 = arith.cmpi eq, %arg0, %c0_i32_72 : i32
    %296 = arith.extui %295 : i1 to i32
    %c0_i32_73 = arith.constant 0 : i32
    %297 = arith.cmpi ne, %296, %c0_i32_73 : i32
    scf.if %297 {
      %c0_74 = arith.constant 0 : index
      %c0_75 = arith.constant 0 : index
      %298 = vector.load %arg5[%c0_74, %c0_75] : memref<8x128xf32, #tpu.memory_space<vmem>>, vector<8x128xf32>
      tpu.vector_store %arg5[%c0_74, %c0_75], %289 {strides = array<i32>} : memref<8x128xf32, #tpu.memory_space<vmem>>, vector<8x128xf32>,
    } else {
    }
    return
  }
  func.func @transform_0(%arg0: i32) -> (i32, i32, i32) {
    %c0_i32 = arith.constant 0 : i32
    %c0_i32_0 = arith.constant 0 : i32
    %c0_i32_1 = arith.constant 0 : i32
    return %arg0, %c0_i32, %c0_i32_0 : i32, i32, i32
  }
  func.func @transform_1(%arg0: i32) -> (i32, i32) {
    %c0_i32 = arith.constant 0 : i32
    %c0_i32_0 = arith.constant 0 : i32
    %c0_i32_1 = arith.constant 0 : i32
    return %c0_i32, %c0_i32_0 : i32, i32
  }
  func.func @transform_2(%arg0: i32) -> (i32, i32) {
    %c0_i32 = arith.constant 0 : i32
    %c0_i32_0 = arith.constant 0 : i32
    %c0_i32_1 = arith.constant 0 : i32
    return %c0_i32, %c0_i32_0 : i32, i32
  }
  func.func @transform_3(%arg0: i32) -> (i32, i32, i32) {
    %c0_i32 = arith.constant 0 : i32
    %c0_i32_0 = arith.constant 0 : i32
    %c0_i32_1 = arith.constant 0 : i32
    return %arg0, %c0_i32, %c0_i32_0 : i32, i32, i32
  }
  func.func @transform_4(%arg0: i32) -> (i32, i32) {
    %c0_i32 = arith.constant 0 : i32
    %c0_i32_0 = arith.constant 0 : i32
    %c0_i32_1 = arith.constant 0 : i32
    return %c0_i32, %c0_i32_0 : i32, i32
  }
}

module attributes {stable_mosaic.version = 11 : i64} {
  func.func @matmul_bias_kernel(%arg0: i32, %arg1: memref<64x4xf32, #tpu.memory_space<vmem>>, %arg2: memref<4x384xf32, #tpu.memory_space<vmem>>, %arg3: memref<1x384xf32, #tpu.memory_space<vmem>>, %arg4: memref<64x384xf32, #tpu.memory_space<vmem>>) attributes {dimension_semantics = [#tpu.dimension_semantics<parallel>], iteration_bounds = array<i64: 1>, scalar_prefetch = 0 : i64, scratch_operands = 0 : i64, tpu.core_type = #tpu.core_type<tc>, window_params = [{transform_indices = @transform_0, window_bounds = array<i64: 64, 4>}, {pipeline_mode = #tpu.pipeline_mode<synchronous>, transform_indices = @transform_1, window_bounds = array<i64: 4, 384>}, {pipeline_mode = #tpu.pipeline_mode<synchronous>, transform_indices = @transform_2, window_bounds = array<i64: 1, 384>}, {transform_indices = @transform_3, window_bounds = array<i64: 64, 384>}]} {
    %c0 = arith.constant 0 : index
    %c0_0 = arith.constant 0 : index
    %0 = vector.load %arg1[%c0, %c0_0] : memref<64x4xf32, #tpu.memory_space<vmem>>, vector<64x4xf32>
    %c0_1 = arith.constant 0 : index
    %c0_2 = arith.constant 0 : index
    %1 = vector.load %arg2[%c0_1, %c0_2] : memref<4x384xf32, #tpu.memory_space<vmem>>, vector<4x384xf32>
    %cst = arith.constant dense<0.000000e+00> : vector<64x384xf32>
    %2 = tpu.matmul %0, %1, %cst {dimension_numbers = #tpu.dot_dimension_numbers<[1], [0], [0], [1], [0, 0, 1, 1], [], []>} : vector<64x4xf32>, vector<4x384xf32>, vector<64x384xf32> -> vector<64x384xf32>
    %c0_3 = arith.constant 0 : index
    %c0_4 = arith.constant 0 : index
    %3 = vector.load %arg3[%c0_3, %c0_4] : memref<1x384xf32, #tpu.memory_space<vmem>>, vector<1x384xf32>
    %4 = vector.broadcast %3 : vector<1x384xf32> to vector<64x384xf32>
    %5 = arith.addf %2, %4 : vector<64x384xf32>
    %c0_5 = arith.constant 0 : index
    %c0_6 = arith.constant 0 : index
    %6 = vector.load %arg4[%c0_5, %c0_6] : memref<64x384xf32, #tpu.memory_space<vmem>>, vector<64x384xf32>
    tpu.vector_store %arg4[%c0_5, %c0_6], %5 {strides = array<i32>} : memref<64x384xf32, #tpu.memory_space<vmem>>, vector<64x384xf32>,
    return
  }
  func.func @transform_0(%arg0: i32) -> (i32, i32) {
    %c0_i32 = arith.constant 0 : i32
    %c0_i32_0 = arith.constant 0 : i32
    return %arg0, %c0_i32 : i32, i32
  }
  func.func @transform_1(%arg0: i32) -> (i32, i32) {
    %c0_i32 = arith.constant 0 : i32
    %c0_i32_0 = arith.constant 0 : i32
    %c0_i32_1 = arith.constant 0 : i32
    return %c0_i32, %c0_i32_0 : i32, i32
  }
  func.func @transform_2(%arg0: i32) -> (i32, i32) {
    %c0_i32 = arith.constant 0 : i32
    %c0_i32_0 = arith.constant 0 : i32
    %c0_i32_1 = arith.constant 0 : i32
    return %c0_i32, %c0_i32_0 : i32, i32
  }
  func.func @transform_3(%arg0: i32) -> (i32, i32) {
    %c0_i32 = arith.constant 0 : i32
    %c0_i32_0 = arith.constant 0 : i32
    return %arg0, %c0_i32 : i32, i32
  }
}

module attributes {stable_mosaic.version = 11 : i64} {
  func.func @matmul_bias_kernel(%arg0: i32, %arg1: memref<64x128xf32, #tpu.memory_space<vmem>>, %arg2: memref<128x384xf32, #tpu.memory_space<vmem>>, %arg3: memref<1x384xf32, #tpu.memory_space<vmem>>, %arg4: memref<64x384xf32, #tpu.memory_space<vmem>>) attributes {dimension_semantics = [#tpu.dimension_semantics<parallel>], iteration_bounds = array<i64: 1>, scalar_prefetch = 0 : i64, scratch_operands = 0 : i64, tpu.core_type = #tpu.core_type<tc>, window_params = [{transform_indices = @transform_0, window_bounds = array<i64: 64, 128>}, {pipeline_mode = #tpu.pipeline_mode<synchronous>, transform_indices = @transform_1, window_bounds = array<i64: 128, 384>}, {pipeline_mode = #tpu.pipeline_mode<synchronous>, transform_indices = @transform_2, window_bounds = array<i64: 1, 384>}, {transform_indices = @transform_3, window_bounds = array<i64: 64, 384>}]} {
    %c0 = arith.constant 0 : index
    %c0_0 = arith.constant 0 : index
    %0 = vector.load %arg1[%c0, %c0_0] : memref<64x128xf32, #tpu.memory_space<vmem>>, vector<64x128xf32>
    %c0_1 = arith.constant 0 : index
    %c0_2 = arith.constant 0 : index
    %1 = vector.load %arg2[%c0_1, %c0_2] : memref<128x384xf32, #tpu.memory_space<vmem>>, vector<128x384xf32>
    %cst = arith.constant dense<0.000000e+00> : vector<64x384xf32>
    %2 = tpu.matmul %0, %1, %cst {dimension_numbers = #tpu.dot_dimension_numbers<[1], [0], [0], [1], [0, 0, 1, 1], [], []>} : vector<64x128xf32>, vector<128x384xf32>, vector<64x384xf32> -> vector<64x384xf32>
    %c0_3 = arith.constant 0 : index
    %c0_4 = arith.constant 0 : index
    %3 = vector.load %arg3[%c0_3, %c0_4] : memref<1x384xf32, #tpu.memory_space<vmem>>, vector<1x384xf32>
    %4 = vector.broadcast %3 : vector<1x384xf32> to vector<64x384xf32>
    %5 = arith.addf %2, %4 : vector<64x384xf32>
    %c0_5 = arith.constant 0 : index
    %c0_6 = arith.constant 0 : index
    %6 = vector.load %arg4[%c0_5, %c0_6] : memref<64x384xf32, #tpu.memory_space<vmem>>, vector<64x384xf32>
    tpu.vector_store %arg4[%c0_5, %c0_6], %5 {strides = array<i32>} : memref<64x384xf32, #tpu.memory_space<vmem>>, vector<64x384xf32>,
    return
  }
  func.func @transform_0(%arg0: i32) -> (i32, i32) {
    %c0_i32 = arith.constant 0 : i32
    %c0_i32_0 = arith.constant 0 : i32
    return %arg0, %c0_i32 : i32, i32
  }
  func.func @transform_1(%arg0: i32) -> (i32, i32) {
    %c0_i32 = arith.constant 0 : i32
    %c0_i32_0 = arith.constant 0 : i32
    %c0_i32_1 = arith.constant 0 : i32
    return %c0_i32, %c0_i32_0 : i32, i32
  }
  func.func @transform_2(%arg0: i32) -> (i32, i32) {
    %c0_i32 = arith.constant 0 : i32
    %c0_i32_0 = arith.constant 0 : i32
    %c0_i32_1 = arith.constant 0 : i32
    return %c0_i32, %c0_i32_0 : i32, i32
  }
  func.func @transform_3(%arg0: i32) -> (i32, i32) {
    %c0_i32 = arith.constant 0 : i32
    %c0_i32_0 = arith.constant 0 : i32
    return %arg0, %c0_i32 : i32, i32
  }
}

module attributes {stable_mosaic.version = 11 : i64} {
  func.func @matmul_bias_kernel(%arg0: i32, %arg1: memref<16x128xf32, #tpu.memory_space<vmem>>, %arg2: memref<128x128xf32, #tpu.memory_space<vmem>>, %arg3: memref<1x128xf32, #tpu.memory_space<vmem>>, %arg4: memref<16x128xf32, #tpu.memory_space<vmem>>) attributes {dimension_semantics = [#tpu.dimension_semantics<parallel>], iteration_bounds = array<i64: 1>, scalar_prefetch = 0 : i64, scratch_operands = 0 : i64, tpu.core_type = #tpu.core_type<tc>, window_params = [{transform_indices = @transform_0, window_bounds = array<i64: 16, 128>}, {pipeline_mode = #tpu.pipeline_mode<synchronous>, transform_indices = @transform_1, window_bounds = array<i64: 128, 128>}, {pipeline_mode = #tpu.pipeline_mode<synchronous>, transform_indices = @transform_2, window_bounds = array<i64: 1, 128>}, {transform_indices = @transform_3, window_bounds = array<i64: 16, 128>}]} {
    %c0 = arith.constant 0 : index
    %c0_0 = arith.constant 0 : index
    %0 = vector.load %arg1[%c0, %c0_0] : memref<16x128xf32, #tpu.memory_space<vmem>>, vector<16x128xf32>
    %c0_1 = arith.constant 0 : index
    %c0_2 = arith.constant 0 : index
    %1 = vector.load %arg2[%c0_1, %c0_2] : memref<128x128xf32, #tpu.memory_space<vmem>>, vector<128x128xf32>
    %cst = arith.constant dense<0.000000e+00> : vector<16x128xf32>
    %2 = tpu.matmul %0, %1, %cst {dimension_numbers = #tpu.dot_dimension_numbers<[1], [0], [0], [1], [0, 0, 1, 1], [], []>} : vector<16x128xf32>, vector<128x128xf32>, vector<16x128xf32> -> vector<16x128xf32>
    %c0_3 = arith.constant 0 : index
    %c0_4 = arith.constant 0 : index
    %3 = vector.load %arg3[%c0_3, %c0_4] : memref<1x128xf32, #tpu.memory_space<vmem>>, vector<1x128xf32>
    %4 = vector.broadcast %3 : vector<1x128xf32> to vector<16x128xf32>
    %5 = arith.addf %2, %4 : vector<16x128xf32>
    %c0_5 = arith.constant 0 : index
    %c0_6 = arith.constant 0 : index
    %6 = vector.load %arg4[%c0_5, %c0_6] : memref<16x128xf32, #tpu.memory_space<vmem>>, vector<16x128xf32>
    tpu.vector_store %arg4[%c0_5, %c0_6], %5 {strides = array<i32>} : memref<16x128xf32, #tpu.memory_space<vmem>>, vector<16x128xf32>,
    return
  }
  func.func @transform_0(%arg0: i32) -> (i32, i32) {
    %c0_i32 = arith.constant 0 : i32
    %c0_i32_0 = arith.constant 0 : i32
    return %arg0, %c0_i32 : i32, i32
  }
  func.func @transform_1(%arg0: i32) -> (i32, i32) {
    %c0_i32 = arith.constant 0 : i32
    %c0_i32_0 = arith.constant 0 : i32
    %c0_i32_1 = arith.constant 0 : i32
    return %c0_i32, %c0_i32_0 : i32, i32
  }
  func.func @transform_2(%arg0: i32) -> (i32, i32) {
    %c0_i32 = arith.constant 0 : i32
    %c0_i32_0 = arith.constant 0 : i32
    %c0_i32_1 = arith.constant 0 : i32
    return %c0_i32, %c0_i32_0 : i32, i32
  }
  func.func @transform_3(%arg0: i32) -> (i32, i32) {
    %c0_i32 = arith.constant 0 : i32
    %c0_i32_0 = arith.constant 0 : i32
    return %arg0, %c0_i32 : i32, i32
  }
}

</mosaic_0001>

<llo_original>
// kernel: model_forward.7
$region0: #{model_forward.7}
  #allocation0 [shape = 'u32[]', space=smem, size = 0x4, offset = 0x4, fixed_abs, tag = 'smem constant byte address 0x4 - core index']
  #allocation1 [shape = 'u32[72,128]{1,0:T(1,128)}', space=vmem, size = 0x9000, scoped, tag = 'internal scratch']
  %s0 = inlined_call_operand.vmem [shape: f32[64,128], index: 0, kind: input, shape index: {}]
  %s1 = inlined_call_operand.hbm [shape: f32[128,384], index: 1, kind: input, shape index: {}]
  %s2 = inlined_call_operand.vmem [shape: f32[1,384], index: 2, kind: input, shape index: {}]
  %s3 = inlined_call_operand.vmem [shape: f32[64,384], index: 3, kind: output, shape index: {}]
  %s4 = sld [smem:[#allocation0]]
  $region26: #{model_forward.7} parent=0
    _
  %s6 = ssub.s32 1, %s4
  %s7 = scalar_select 0, %s6, %s4
  $region1: #{model_forward.7} parent=0
    #allocation2 [shape = 'u8[196608]{0}', space=vmem, size = 0x30000, scoped, tag = 'input window, operand 1, single buffered']
    #allocation3 [shape = 's32[1]{0}', space=sflag, size = 0x4, scoped, tag = 'scoped memory for model_forward.7']
    %8 = vsyncpa [#allocation3], 0
    // Predicated region
    $region2: #{model_forward.7} parent=1 // pred_check
      _
    $region3: #{model_forward.7} parent=1 // pred_check_branch
      %10 = sbr.rel (0) target = $region5
    $region4: #{model_forward.7} parent=1 // pred_region
      _
    $region5: #{model_forward.7} parent=1 // pred_fallthru
      _
    // Predicated region
    $region6: #{model_forward.7} parent=1 // pred_check
      _
    $region7: #{model_forward.7} parent=1 // pred_check_branch
      %12 = sbr.rel (0) target = $region9
    $region8: #{model_forward.7} parent=1 // pred_region
      %14 = vsyncadd [#allocation3], 0
      %s15 = sshll.u32 %s1, 4
      %s16 = int_to_ptr.hbm [resolvable:$true] %s15
      %s17 = sshll.u32 [#allocation2], 4
      %s18 = int_to_ptr.vmem [resolvable:$true] %s17
      %23 = dma.hbm_to_vmem [thread:$0]  %s16, 6144, %s18, [#allocation3], 384, 384, 24
    $region9: #{model_forward.7} parent=1 // pred_fallthru
      _
    // Predicated region
    $region10: #{model_forward.7} parent=1 // pred_check
      _
    $region11: #{model_forward.7} parent=1 // pred_check_branch
      %25 = sbr.rel (0) target = $region13
    $region12: #{model_forward.7} parent=1 // pred_region
      _
    $region13: #{model_forward.7} parent=1 // pred_fallthru
      _
    // Predicated region
    $region14: #{model_forward.7} parent=1 // pred_check
      _
    $region15: #{model_forward.7} parent=1 // pred_check_branch
      %27 = sbr.rel (0) target = $region17
    $region16: #{model_forward.7} parent=1 // pred_region
      %29 = dma.done [#allocation3], 6144
    $region17: #{model_forward.7} parent=1 // pred_fallthru
      _
    %v30 = vld [vmem:[%s0] sm:$0xff]
    %v31 = vld [vmem:[%s0 + $0x8] sm:$0xff]
    %v32 = vld [vmem:[%s0 + $0x10] sm:$0xff]
    %v33 = vld [vmem:[%s0 + $0x18] sm:$0xff]
    %v34 = vld [vmem:[%s0 + $0x20] sm:$0xff]
    %v35 = vld [vmem:[%s0 + $0x28] sm:$0xff]
    %v36 = vld [vmem:[%s0 + $0x30] sm:$0xff]
    %v37 = vld [vmem:[%s0 + $0x38] sm:$0xff]
    %v38 = vld [vmem:[#allocation2] sm:$0xff]
    %v39 = vld [vmem:[#allocation2 + $0x8] sm:$0xff]
    %v40 = vld [vmem:[#allocation2 + $0x10] sm:$0xff]
    %v41 = vld [vmem:[#allocation2 + $0x18] sm:$0xff]
    %v42 = vld [vmem:[#allocation2 + $0x20] sm:$0xff]
    %v43 = vld [vmem:[#allocation2 + $0x28] sm:$0xff]
    %v44 = vld [vmem:[#allocation2 + $0x30] sm:$0xff]
    %v45 = vld [vmem:[#allocation2 + $0x38] sm:$0xff]
    %v46 = vld [vmem:[#allocation2 + $0x40] sm:$0xff]
    %v47 = vld [vmem:[#allocation2 + $0x48] sm:$0xff]
    %v48 = vld [vmem:[#allocation2 + $0x50] sm:$0xff]
    %v49 = vld [vmem:[#allocation2 + $0x58] sm:$0xff]
    %v50 = vld [vmem:[#allocation2 + $0x60] sm:$0xff]
    %v51 = vld [vmem:[#allocation2 + $0x68] sm:$0xff]
    %v52 = vld [vmem:[#allocation2 + $0x70] sm:$0xff]
    %v53 = vld [vmem:[#allocation2 + $0x78] sm:$0xff]
    %v54 = vld [vmem:[#allocation2 + $0x80] sm:$0xff]
    %v55 = vld [vmem:[#allocation2 + $0x88] sm:$0xff]
    %v56 = vld [vmem:[#allocation2 + $0x90] sm:$0xff]
    %v57 = vld [vmem:[#allocation2 + $0x98] sm:$0xff]
    %v58 = vld [vmem:[#allocation2 + $0xa0] sm:$0xff]
    %v59 = vld [vmem:[#allocation2 + $0xa8] sm:$0xff]
    %v60 = vld [vmem:[#allocation2 + $0xb0] sm:$0xff]
    %v61 = vld [vmem:[#allocation2 + $0xb8] sm:$0xff]
    %v62 = vld [vmem:[#allocation2 + $0xc0] sm:$0xff]
    %v63 = vld [vmem:[#allocation2 + $0xc8] sm:$0xff]
    %v64 = vld [vmem:[#allocation2 + $0xd0] sm:$0xff]
    %v65 = vld [vmem:[#allocation2 + $0xd8] sm:$0xff]
    %v66 = vld [vmem:[#allocation2 + $0xe0] sm:$0xff]
    %v67 = vld [vmem:[#allocation2 + $0xe8] sm:$0xff]
    %v68 = vld [vmem:[#allocation2 + $0xf0] sm:$0xff]
    %v69 = vld [vmem:[#allocation2 + $0xf8] sm:$0xff]
    %v70 = vld [vmem:[#allocation2 + $0x100] sm:$0xff]
    %v71 = vld [vmem:[#allocation2 + $0x108] sm:$0xff]
    %v72 = vld [vmem:[#allocation2 + $0x110] sm:$0xff]
    %v73 = vld [vmem:[#allocation2 + $0x118] sm:$0xff]
    %v74 = vld [vmem:[#allocation2 + $0x120] sm:$0xff]
    %v75 = vld [vmem:[#allocation2 + $0x128] sm:$0xff]
    %v76 = vld [vmem:[#allocation2 + $0x130] sm:$0xff]
    %v77 = vld [vmem:[#allocation2 + $0x138] sm:$0xff]
    %v78 = vld [vmem:[#allocation2 + $0x140] sm:$0xff]
    %v79 = vld [vmem:[#allocation2 + $0x148] sm:$0xff]
    %v80 = vld [vmem:[#allocation2 + $0x150] sm:$0xff]
    %v81 = vld [vmem:[#allocation2 + $0x158] sm:$0xff]
    %v82 = vld [vmem:[#allocation2 + $0x160] sm:$0xff]
    %v83 = vld [vmem:[#allocation2 + $0x168] sm:$0xff]
    %v84 = vld [vmem:[#allocation2 + $0x170] sm:$0xff]
    %v85 = vld [vmem:[#allocation2 + $0x178] sm:$0xff]
    %v86 = vld [vmem:[%s2] sm:$0x7]
    %v88 = vperm.slane %v86, 0
    %v89 = vperm.slane %v86, 1
    %v90 = vperm.slane %v86, 2
    %94 = vmatpush.msra.mxu0 %v83
    %95 = vmatpush.msra.mxu0 %v80
    %96 = vmatpush.msra.mxu0 %v77
    %97 = vmatpush.msra.mxu0 %v74
    %98 = vmatpush.msra.mxu0 %v71
    %99 = vmatpush.msra.mxu0 %v68
    %100 = vmatpush.msra.mxu0 %v65
    %101 = vmatpush.msra.mxu0 %v62
    %102 = vmatpush.msra.mxu0 %v59
    %103 = vmatpush.msra.mxu0 %v56
    %104 = vmatpush.msra.mxu0 %v53
    %105 = vmatpush.msra.mxu0 %v50
    %106 = vmatpush.msra.mxu0 %v47
    %107 = vmatpush.msra.mxu0 %v44
    %108 = vmatpush.msra.mxu0 %v41
    %109 = vmatpush.msra.mxu0 %v38
    %110 = vmatmul.f32.gmra.mxu0 %v30
    %v111 = vpop.f32.mrf.mxu0
    %v112 = vadd.f32 %v88, %v111
    %113 = vmatmul.f32.gmra.mxu0 %v31
    %v114 = vpop.f32.mrf.mxu0
    %v115 = vadd.f32 %v88, %v114
    %116 = vmatmul.f32.gmra.mxu0 %v32
    %v117 = vpop.f32.mrf.mxu0
    %v118 = vadd.f32 %v88, %v117
    %119 = vmatmul.f32.gmra.mxu0 %v33
    %v120 = vpop.f32.mrf.mxu0
    %v121 = vadd.f32 %v88, %v120
    %122 = vmatmul.f32.gmra.mxu0 %v34
    %v123 = vpop.f32.mrf.mxu0
    %v124 = vadd.f32 %v88, %v123
    %125 = vmatmul.f32.gmra.mxu0 %v35
    %v126 = vpop.f32.mrf.mxu0
    %v127 = vadd.f32 %v88, %v126
    %128 = vmatmul.f32.gmra.mxu0 %v36
    %v129 = vpop.f32.mrf.mxu0
    %v130 = vadd.f32 %v88, %v129
    %131 = vmatmul.f32.gmra.mxu0 %v37
    %v132 = vpop.f32.mrf.mxu0
    %v133 = vadd.f32 %v88, %v132
    %134 = vdwg.mxu0
    %135 = vmatpush.msra.mxu0 %v84
    %136 = vmatpush.msra.mxu0 %v81
    %137 = vmatpush.msra.mxu0 %v78
    %138 = vmatpush.msra.mxu0 %v75
    %139 = vmatpush.msra.mxu0 %v72
    %140 = vmatpush.msra.mxu0 %v69
    %141 = vmatpush.msra.mxu0 %v66
    %142 = vmatpush.msra.mxu0 %v63
    %143 = vmatpush.msra.mxu0 %v60
    %144 = vmatpush.msra.mxu0 %v57
    %145 = vmatpush.msra.mxu0 %v54
    %146 = vmatpush.msra.mxu0 %v51
    %147 = vmatpush.msra.mxu0 %v48
    %148 = vmatpush.msra.mxu0 %v45
    %149 = vmatpush.msra.mxu0 %v42
    %150 = vmatpush.msra.mxu0 %v39
    %151 = vmatmul.f32.gmra.mxu0 %v30
    %v152 = vpop.f32.mrf.mxu0
    %v153 = vadd.f32 %v89, %v152
    %154 = vmatmul.f32.gmra.mxu0 %v31
    %v155 = vpop.f32.mrf.mxu0
    %v156 = vadd.f32 %v89, %v155
    %157 = vmatmul.f32.gmra.mxu0 %v32
    %v158 = vpop.f32.mrf.mxu0
    %v159 = vadd.f32 %v89, %v158
    %160 = vmatmul.f32.gmra.mxu0 %v33
    %v161 = vpop.f32.mrf.mxu0
    %v162 = vadd.f32 %v89, %v161
    %163 = vmatmul.f32.gmra.mxu0 %v34
    %v164 = vpop.f32.mrf.mxu0
    %v165 = vadd.f32 %v89, %v164
    %166 = vmatmul.f32.gmra.mxu0 %v35
    %v167 = vpop.f32.mrf.mxu0
    %v168 = vadd.f32 %v89, %v167
    %169 = vmatmul.f32.gmra.mxu0 %v36
    %v170 = vpop.f32.mrf.mxu0
    %v171 = vadd.f32 %v89, %v170
    %172 = vmatmul.f32.gmra.mxu0 %v37
    %v173 = vpop.f32.mrf.mxu0
    %v174 = vadd.f32 %v89, %v173
    %175 = vdwg.mxu0
    %176 = vmatpush.msra.mxu0 %v85
    %177 = vmatpush.msra.mxu0 %v82
    %178 = vmatpush.msra.mxu0 %v79
    %179 = vmatpush.msra.mxu0 %v76
    %180 = vmatpush.msra.mxu0 %v73
    %181 = vmatpush.msra.mxu0 %v70
    %182 = vmatpush.msra.mxu0 %v67
    %183 = vmatpush.msra.mxu0 %v64
    %184 = vmatpush.msra.mxu0 %v61
    %185 = vmatpush.msra.mxu0 %v58
    %186 = vmatpush.msra.mxu0 %v55
    %187 = vmatpush.msra.mxu0 %v52
    %188 = vmatpush.msra.mxu0 %v49
    %189 = vmatpush.msra.mxu0 %v46
    %190 = vmatpush.msra.mxu0 %v43
    %191 = vmatpush.msra.mxu0 %v40
    %192 = vmatmul.f32.gmra.mxu0 %v30
    %v193 = vpop.f32.mrf.mxu0
    %v194 = vadd.f32 %v90, %v193
    %195 = vmatmul.f32.gmra.mxu0 %v31
    %v196 = vpop.f32.mrf.mxu0
    %v197 = vadd.f32 %v90, %v196
    %198 = vmatmul.f32.gmra.mxu0 %v32
    %v199 = vpop.f32.mrf.mxu0
    %v200 = vadd.f32 %v90, %v199
    %201 = vmatmul.f32.gmra.mxu0 %v33
    %v202 = vpop.f32.mrf.mxu0
    %v203 = vadd.f32 %v90, %v202
    %204 = vmatmul.f32.gmra.mxu0 %v34
    %v205 = vpop.f32.mrf.mxu0
    %v206 = vadd.f32 %v90, %v205
    %207 = vmatmul.f32.gmra.mxu0 %v35
    %v208 = vpop.f32.mrf.mxu0
    %v209 = vadd.f32 %v90, %v208
    %210 = vmatmul.f32.gmra.mxu0 %v36
    %v211 = vpop.f32.mrf.mxu0
    %v212 = vadd.f32 %v90, %v211
    %213 = vmatmul.f32.gmra.mxu0 %v37
    %v214 = vpop.f32.mrf.mxu0
    %v215 = vadd.f32 %v90, %v214
    %216 = vdwg.mxu0
    %217 = vst [vmem:[%s3] sm:$0xff] %v112
    %218 = vst [vmem:[%s3 + $0x8] sm:$0xff] %v153
    %219 = vst [vmem:[%s3 + $0x10] sm:$0xff] %v194
    %220 = vst [vmem:[%s3 + $0x18] sm:$0xff] %v115
    %221 = vst [vmem:[%s3 + $0x20] sm:$0xff] %v156
    %222 = vst [vmem:[%s3 + $0x28] sm:$0xff] %v197
    %223 = vst [vmem:[%s3 + $0x30] sm:$0xff] %v118
    %224 = vst [vmem:[%s3 + $0x38] sm:$0xff] %v159
    %225 = vst [vmem:[%s3 + $0x40] sm:$0xff] %v200
    %226 = vst [vmem:[%s3 + $0x48] sm:$0xff] %v121
    %227 = vst [vmem:[%s3 + $0x50] sm:$0xff] %v162
    %228 = vst [vmem:[%s3 + $0x58] sm:$0xff] %v203
    %229 = vst [vmem:[%s3 + $0x60] sm:$0xff] %v124
    %230 = vst [vmem:[%s3 + $0x68] sm:$0xff] %v165
    %231 = vst [vmem:[%s3 + $0x70] sm:$0xff] %v206
    %232 = vst [vmem:[%s3 + $0x78] sm:$0xff] %v127
    %233 = vst [vmem:[%s3 + $0x80] sm:$0xff] %v168
    %234 = vst [vmem:[%s3 + $0x88] sm:$0xff] %v209
    %235 = vst [vmem:[%s3 + $0x90] sm:$0xff] %v130
    %236 = vst [vmem:[%s3 + $0x98] sm:$0xff] %v171
    %237 = vst [vmem:[%s3 + $0xa0] sm:$0xff] %v212
    %238 = vst [vmem:[%s3 + $0xa8] sm:$0xff] %v133
    %239 = vst [vmem:[%s3 + $0xb0] sm:$0xff] %v174
    %240 = vst [vmem:[%s3 + $0xb8] sm:$0xff] %v215
    // Predicated region
    $region18: #{model_forward.7} parent=1 // pred_check
      _
    $region19: #{model_forward.7} parent=1 // pred_check_branch
      %242 = sbr.rel (0) target = $region21
    $region20: #{model_forward.7} parent=1 // pred_region
      _
    $region21: #{model_forward.7} parent=1 // pred_fallthru
      _
    // Predicated region
    $region22: #{model_forward.7} parent=1 // pred_check
      _
    $region23: #{model_forward.7} parent=1 // pred_check_branch
      %244 = sbr.rel (0) target = $region25
    $region24: #{model_forward.7} parent=1 // pred_region
      _
    $region25: #{model_forward.7} parent=1 // pred_fallthru
      _
    %245 = vsyncpa [#allocation3], 1

// kernel: model_forward.5
$region0: #{model_forward.5}
  #allocation0 [shape = 'u32[]', space=smem, size = 0x4, offset = 0x4, fixed_abs, tag = 'smem constant byte address 0x4 - core index']
  #allocation1 [shape = 'u32[72,128]{1,0:T(1,128)}', space=vmem, size = 0x9000, scoped, tag = 'internal scratch']
  %s0 = inlined_call_operand.vmem [shape: f32[64,4], index: 0, kind: input, shape index: {}]
  %s1 = inlined_call_operand.vmem [shape: f32[4,384], index: 1, kind: input, shape index: {}]
  %s2 = inlined_call_operand.vmem [shape: f32[1,384], index: 2, kind: input, shape index: {}]
  %s3 = inlined_call_operand.vmem [shape: f32[64,384], index: 3, kind: output, shape index: {}]
  %s4 = sld [smem:[#allocation0]]
  $region22: #{model_forward.5} parent=0
    _
  %s6 = ssub.s32 1, %s4
  %s7 = scalar_select 0, %s6, %s4
  // Predicated region
  $region2: #{model_forward.5} parent=0 // pred_check
    _
  $region3: #{model_forward.5} parent=0 // pred_check_branch
    %9 = sbr.rel (0) target = $region5
  $region4: #{model_forward.5} parent=0 // pred_region
    _
  $region5: #{model_forward.5} parent=0 // pred_fallthru
    _
  // Predicated region
  $region6: #{model_forward.5} parent=0 // pred_check
    _
  $region7: #{model_forward.5} parent=0 // pred_check_branch
    %11 = sbr.rel (0) target = $region9
  $region8: #{model_forward.5} parent=0 // pred_region
    _
  $region9: #{model_forward.5} parent=0 // pred_fallthru
    _
  // Predicated region
  $region10: #{model_forward.5} parent=0 // pred_check
    _
  $region11: #{model_forward.5} parent=0 // pred_check_branch
    %13 = sbr.rel (0) target = $region13
  $region12: #{model_forward.5} parent=0 // pred_region
    _
  $region13: #{model_forward.5} parent=0 // pred_fallthru
    _
  %v14 = vld [vmem:[%s0] sm:$0xff]
  %v15 = vld [vmem:[%s0 + $0x8] sm:$0xff]
  %v16 = vld [vmem:[%s0 + $0x10] sm:$0xff]
  %v17 = vld [vmem:[%s0 + $0x18] sm:$0xff]
  %v18 = vld [vmem:[%s0 + $0x20] sm:$0xff]
  %v19 = vld [vmem:[%s0 + $0x28] sm:$0xff]
  %v20 = vld [vmem:[%s0 + $0x30] sm:$0xff]
  %v21 = vld [vmem:[%s0 + $0x38] sm:$0xff]
  %v22 = vld [vmem:[%s1] sm:$0xff]
  %v23 = vld [vmem:[%s1 + $0x8] sm:$0xf]
  %v24 = vld [vmem:[%s2] sm:$0x7]
  %v26 = vperm.slane %v24, 0
  %v27 = vperm.slane %v24, 1
  %v28 = vperm.slane %v24, 2
  %34 = vst [vmem:[#allocation1] ss:$2 sm:$0xff] %v22
  %s35 = scalar_lea.vmem [#allocation1], 16
  %36 = vst [vmem:[%s35] ss:$2 sm:$0xff] %v23
  %v37 = vld.sshfl [vmem:[#allocation1] sm:$0xff pattern:$0x75316420]
  %v38 = vld.sshfl [vmem:[#allocation1 + $0x8] sm:$0xff pattern:$0x75316420]
  %v39 = vld.sshfl [vmem:[#allocation1 + $0x10] sm:$0xff pattern:$0x75316420]
  %vm40 = vcmask 31744
  %v42 = vsel %vm40, %v14, 0
  %v45 = vsel %vm40, %v15, 0
  %v48 = vsel %vm40, %v16, 0
  %v51 = vsel %vm40, %v17, 0
  %v54 = vsel %vm40, %v18, 0
  %v57 = vsel %vm40, %v19, 0
  %v60 = vsel %vm40, %v20, 0
  %v63 = vsel %vm40, %v21, 0
  %vm65 = vcmask 1043456
  %v66 = vsel %vm65, %v37, 0
  %v68 = vsel %vm65, %v38, 0
  %v70 = vsel %vm65, %v39, 0
  %72 = vmatpush.msra.mxu0 0.0
  %73 = vmatpush.msra.mxu0 0.0
  %74 = vmatpush.msra.mxu0 0.0
  %75 = vmatpush.msra.mxu0 0.0
  %76 = vmatpush.msra.mxu0 0.0
  %77 = vmatpush.msra.mxu0 0.0
  %78 = vmatpush.msra.mxu0 0.0
  %79 = vmatpush.msra.mxu0 0.0
  %80 = vmatpush.msra.mxu0 0.0
  %81 = vmatpush.msra.mxu0 0.0
  %82 = vmatpush.msra.mxu0 0.0
  %83 = vmatpush.msra.mxu0 0.0
  %84 = vmatpush.msra.mxu0 0.0
  %85 = vmatpush.msra.mxu0 0.0
  %86 = vmatpush.msra.mxu0 0.0
  %87 = vmatpush.msra.mxu0 %v66
  %88 = vmatmul.f32.gmra.mxu0 %v42
  %v89 = vpop.f32.mrf.mxu0
  %v90 = vadd.f32 %v26, %v89
  %91 = vmatmul.f32.gmra.mxu0 %v45
  %v92 = vpop.f32.mrf.mxu0
  %v93 = vadd.f32 %v26, %v92
  %94 = vmatmul.f32.gmra.mxu0 %v48
  %v95 = vpop.f32.mrf.mxu0
  %v96 = vadd.f32 %v26, %v95
  %97 = vmatmul.f32.gmra.mxu0 %v51
  %v98 = vpop.f32.mrf.mxu0
  %v99 = vadd.f32 %v26, %v98
  %100 = vmatmul.f32.gmra.mxu0 %v54
  %v101 = vpop.f32.mrf.mxu0
  %v102 = vadd.f32 %v26, %v101
  %103 = vmatmul.f32.gmra.mxu0 %v57
  %v104 = vpop.f32.mrf.mxu0
  %v105 = vadd.f32 %v26, %v104
  %106 = vmatmul.f32.gmra.mxu0 %v60
  %v107 = vpop.f32.mrf.mxu0
  %v108 = vadd.f32 %v26, %v107
  %109 = vmatmul.f32.gmra.mxu0 %v63
  %v110 = vpop.f32.mrf.mxu0
  %v111 = vadd.f32 %v26, %v110
  %112 = vdwg.mxu0
  %113 = vmatpush.msra.mxu0 0.0
  %114 = vmatpush.msra.mxu0 0.0
  %115 = vmatpush.msra.mxu0 0.0
  %116 = vmatpush.msra.mxu0 0.0
  %117 = vmatpush.msra.mxu0 0.0
  %118 = vmatpush.msra.mxu0 0.0
  %119 = vmatpush.msra.mxu0 0.0
  %120 = vmatpush.msra.mxu0 0.0
  %121 = vmatpush.msra.mxu0 0.0
  %122 = vmatpush.msra.mxu0 0.0
  %123 = vmatpush.msra.mxu0 0.0
  %124 = vmatpush.msra.mxu0 0.0
  %125 = vmatpush.msra.mxu0 0.0
  %126 = vmatpush.msra.mxu0 0.0
  %127 = vmatpush.msra.mxu0 0.0
  %128 = vmatpush.msra.mxu0 %v68
  %129 = vmatmul.f32.gmra.mxu0 %v42
  %v130 = vpop.f32.mrf.mxu0
  %v131 = vadd.f32 %v27, %v130
  %132 = vmatmul.f32.gmra.mxu0 %v45
  %v133 = vpop.f32.mrf.mxu0
  %v134 = vadd.f32 %v27, %v133
  %135 = vmatmul.f32.gmra.mxu0 %v48
  %v136 = vpop.f32.mrf.mxu0
  %v137 = vadd.f32 %v27, %v136
  %138 = vmatmul.f32.gmra.mxu0 %v51
  %v139 = vpop.f32.mrf.mxu0
  %v140 = vadd.f32 %v27, %v139
  %141 = vmatmul.f32.gmra.mxu0 %v54
  %v142 = vpop.f32.mrf.mxu0
  %v143 = vadd.f32 %v27, %v142
  %144 = vmatmul.f32.gmra.mxu0 %v57
  %v145 = vpop.f32.mrf.mxu0
  %v146 = vadd.f32 %v27, %v145
  %147 = vmatmul.f32.gmra.mxu0 %v60
  %v148 = vpop.f32.mrf.mxu0
  %v149 = vadd.f32 %v27, %v148
  %150 = vmatmul.f32.gmra.mxu0 %v63
  %v151 = vpop.f32.mrf.mxu0
  %v152 = vadd.f32 %v27, %v151
  %153 = vdwg.mxu0
  %154 = vmatpush.msra.mxu0 0.0
  %155 = vmatpush.msra.mxu0 0.0
  %156 = vmatpush.msra.mxu0 0.0
  %157 = vmatpush.msra.mxu0 0.0
  %158 = vmatpush.msra.mxu0 0.0
  %159 = vmatpush.msra.mxu0 0.0
  %160 = vmatpush.msra.mxu0 0.0
  %161 = vmatpush.msra.mxu0 0.0
  %162 = vmatpush.msra.mxu0 0.0
  %163 = vmatpush.msra.mxu0 0.0
  %164 = vmatpush.msra.mxu0 0.0
  %165 = vmatpush.msra.mxu0 0.0
  %166 = vmatpush.msra.mxu0 0.0
  %167 = vmatpush.msra.mxu0 0.0
  %168 = vmatpush.msra.mxu0 0.0
  %169 = vmatpush.msra.mxu0 %v70
  %170 = vmatmul.f32.gmra.mxu0 %v42
  %v171 = vpop.f32.mrf.mxu0
  %v172 = vadd.f32 %v28, %v171
  %173 = vmatmul.f32.gmra.mxu0 %v45
  %v174 = vpop.f32.mrf.mxu0
  %v175 = vadd.f32 %v28, %v174
  %176 = vmatmul.f32.gmra.mxu0 %v48
  %v177 = vpop.f32.mrf.mxu0
  %v178 = vadd.f32 %v28, %v177
  %179 = vmatmul.f32.gmra.mxu0 %v51
  %v180 = vpop.f32.mrf.mxu0
  %v181 = vadd.f32 %v28, %v180
  %182 = vmatmul.f32.gmra.mxu0 %v54
  %v183 = vpop.f32.mrf.mxu0
  %v184 = vadd.f32 %v28, %v183
  %185 = vmatmul.f32.gmra.mxu0 %v57
  %v186 = vpop.f32.mrf.mxu0
  %v187 = vadd.f32 %v28, %v186
  %188 = vmatmul.f32.gmra.mxu0 %v60
  %v189 = vpop.f32.mrf.mxu0
  %v190 = vadd.f32 %v28, %v189
  %191 = vmatmul.f32.gmra.mxu0 %v63
  %v192 = vpop.f32.mrf.mxu0
  %v193 = vadd.f32 %v28, %v192
  %194 = vdwg.mxu0
  %195 = vst [vmem:[%s3] sm:$0xff] %v90
  %196 = vst [vmem:[%s3 + $0x8] sm:$0xff] %v131
  %197 = vst [vmem:[%s3 + $0x10] sm:$0xff] %v172
  %198 = vst [vmem:[%s3 + $0x18] sm:$0xff] %v93
  %199 = vst [vmem:[%s3 + $0x20] sm:$0xff] %v134
  %200 = vst [vmem:[%s3 + $0x28] sm:$0xff] %v175
  %201 = vst [vmem:[%s3 + $0x30] sm:$0xff] %v96
  %202 = vst [vmem:[%s3 + $0x38] sm:$0xff] %v137
  %203 = vst [vmem:[%s3 + $0x40] sm:$0xff] %v178
  %204 = vst [vmem:[%s3 + $0x48] sm:$0xff] %v99
  %205 = vst [vmem:[%s3 + $0x50] sm:$0xff] %v140
  %206 = vst [vmem:[%s3 + $0x58] sm:$0xff] %v181
  %207 = vst [vmem:[%s3 + $0x60] sm:$0xff] %v102
  %208 = vst [vmem:[%s3 + $0x68] sm:$0xff] %v143
  %209 = vst [vmem:[%s3 + $0x70] sm:$0xff] %v184
  %210 = vst [vmem:[%s3 + $0x78] sm:$0xff] %v105
  %211 = vst [vmem:[%s3 + $0x80] sm:$0xff] %v146
  %212 = vst [vmem:[%s3 + $0x88] sm:$0xff] %v187
  %213 = vst [vmem:[%s3 + $0x90] sm:$0xff] %v108
  %214 = vst [vmem:[%s3 + $0x98] sm:$0xff] %v149
  %215 = vst [vmem:[%s3 + $0xa0] sm:$0xff] %v190
  %216 = vst [vmem:[%s3 + $0xa8] sm:$0xff] %v111
  %217 = vst [vmem:[%s3 + $0xb0] sm:$0xff] %v152
  %218 = vst [vmem:[%s3 + $0xb8] sm:$0xff] %v193
  // Predicated region
  $region14: #{model_forward.5} parent=0 // pred_check
    _
  $region15: #{model_forward.5} parent=0 // pred_check_branch
    %220 = sbr.rel (0) target = $region17
  $region16: #{model_forward.5} parent=0 // pred_region
    _
  $region17: #{model_forward.5} parent=0 // pred_fallthru
    _
  // Predicated region
  $region18: #{model_forward.5} parent=0 // pred_check
    _
  $region19: #{model_forward.5} parent=0 // pred_check_branch
    %222 = sbr.rel (0) target = $region21
  $region20: #{model_forward.5} parent=0 // pred_region
    _
  $region21: #{model_forward.5} parent=0 // pred_fallthru
    _

// kernel: model_forward.9
$region0: #{model_forward.9}
  #allocation0 [shape = 'u32[]', space=smem, size = 0x4, offset = 0x4, fixed_abs, tag = 'smem constant byte address 0x4 - core index']
  #allocation1 [shape = 'u32[72,128]{1,0:T(1,128)}', space=vmem, size = 0x9000, scoped, tag = 'internal scratch']
  %s0 = inlined_call_operand.vmem [shape: f32[16,128], index: 0, kind: input, shape index: {}]
  %s1 = inlined_call_operand.vmem [shape: f32[128,128], index: 1, kind: input, shape index: {}]
  %s2 = inlined_call_operand.vmem [shape: f32[1,128], index: 2, kind: input, shape index: {}]
  %s3 = inlined_call_operand.vmem [shape: f32[16,128], index: 3, kind: output, shape index: {}]
  %s4 = sld [smem:[#allocation0]]
  $region22: #{model_forward.9} parent=0
    _
  %s6 = ssub.s32 1, %s4
  %s7 = scalar_select 0, %s6, %s4
  // Predicated region
  $region2: #{model_forward.9} parent=0 // pred_check
    _
  $region3: #{model_forward.9} parent=0 // pred_check_branch
    %9 = sbr.rel (0) target = $region5
  $region4: #{model_forward.9} parent=0 // pred_region
    _
  $region5: #{model_forward.9} parent=0 // pred_fallthru
    _
  // Predicated region
  $region6: #{model_forward.9} parent=0 // pred_check
    _
  $region7: #{model_forward.9} parent=0 // pred_check_branch
    %11 = sbr.rel (0) target = $region9
  $region8: #{model_forward.9} parent=0 // pred_region
    _
  $region9: #{model_forward.9} parent=0 // pred_fallthru
    _
  // Predicated region
  $region10: #{model_forward.9} parent=0 // pred_check
    _
  $region11: #{model_forward.9} parent=0 // pred_check_branch
    %13 = sbr.rel (0) target = $region13
  $region12: #{model_forward.9} parent=0 // pred_region
    _
  $region13: #{model_forward.9} parent=0 // pred_fallthru
    _
  %v14 = vld [vmem:[%s0] sm:$0xff]
  %v15 = vld [vmem:[%s0 + $0x8] sm:$0xff]
  %v16 = vld [vmem:[%s1] sm:$0xff]
  %v17 = vld [vmem:[%s1 + $0x8] sm:$0xff]
  %v18 = vld [vmem:[%s1 + $0x10] sm:$0xff]
  %v19 = vld [vmem:[%s1 + $0x18] sm:$0xff]
  %v20 = vld [vmem:[%s1 + $0x20] sm:$0xff]
  %v21 = vld [vmem:[%s1 + $0x28] sm:$0xff]
  %v22 = vld [vmem:[%s1 + $0x30] sm:$0xff]
  %v23 = vld [vmem:[%s1 + $0x38] sm:$0xff]
  %v24 = vld [vmem:[%s1 + $0x40] sm:$0xff]
  %v25 = vld [vmem:[%s1 + $0x48] sm:$0xff]
  %v26 = vld [vmem:[%s1 + $0x50] sm:$0xff]
  %v27 = vld [vmem:[%s1 + $0x58] sm:$0xff]
  %v28 = vld [vmem:[%s1 + $0x60] sm:$0xff]
  %v29 = vld [vmem:[%s1 + $0x68] sm:$0xff]
  %v30 = vld [vmem:[%s1 + $0x70] sm:$0xff]
  %v31 = vld [vmem:[%s1 + $0x78] sm:$0xff]
  %v32 = vld [vmem:[%s2] sm:$0x1]
  %v34 = vperm.slane %v32, 0
  %36 = vmatpush.msra.mxu0 %v31
  %37 = vmatpush.msra.mxu0 %v30
  %38 = vmatpush.msra.mxu0 %v29
  %39 = vmatpush.msra.mxu0 %v28
  %40 = vmatpush.msra.mxu0 %v27
  %41 = vmatpush.msra.mxu0 %v26
  %42 = vmatpush.msra.mxu0 %v25
  %43 = vmatpush.msra.mxu0 %v24
  %44 = vmatpush.msra.mxu0 %v23
  %45 = vmatpush.msra.mxu0 %v22
  %46 = vmatpush.msra.mxu0 %v21
  %47 = vmatpush.msra.mxu0 %v20
  %48 = vmatpush.msra.mxu0 %v19
  %49 = vmatpush.msra.mxu0 %v18
  %50 = vmatpush.msra.mxu0 %v17
  %51 = vmatpush.msra.mxu0 %v16
  %52 = vmatmul.f32.gmra.mxu0 %v14
  %v53 = vpop.f32.mrf.mxu0
  %v54 = vadd.f32 %v34, %v53
  %55 = vmatmul.f32.gmra.mxu0 %v15
  %v56 = vpop.f32.mrf.mxu0
  %v57 = vadd.f32 %v34, %v56
  %58 = vdwg.mxu0
  %59 = vst [vmem:[%s3] sm:$0xff] %v54
  %60 = vst [vmem:[%s3 + $0x8] sm:$0xff] %v57
  // Predicated region
  $region14: #{model_forward.9} parent=0 // pred_check
    _
  $region15: #{model_forward.9} parent=0 // pred_check_branch
    %62 = sbr.rel (0) target = $region17
  $region16: #{model_forward.9} parent=0 // pred_region
    _
  $region17: #{model_forward.9} parent=0 // pred_fallthru
    _
  // Predicated region
  $region18: #{model_forward.9} parent=0 // pred_check
    _
  $region19: #{model_forward.9} parent=0 // pred_check_branch
    %64 = sbr.rel (0) target = $region21
  $region20: #{model_forward.9} parent=0 // pred_region
    _
  $region21: #{model_forward.9} parent=0 // pred_fallthru
    _

// kernel: model_forward.6
$region0: #{model_forward.6}
  #allocation0 [shape = 'u32[]', space=smem, size = 0x4, offset = 0x4, fixed_abs, tag = 'smem constant byte address 0x4 - core index']
  #allocation1 [shape = 'u32[72,128]{1,0:T(1,128)}', space=vmem, size = 0x9000, scoped, tag = 'internal scratch']
  #allocation2 [shape = 'f32[8,128]{1,0:T(8,128)}', space=vmem, size = 0x1000, scoped, tag = 'scratch operand']
  %s0 = inlined_call_operand.vmem [shape: f32[8,8,384], index: 0, kind: input, shape index: {}]
  %s1 = inlined_call_operand.hbm [shape: f32[128,384], index: 1, kind: input, shape index: {}]
  %s2 = inlined_call_operand.vmem [shape: f32[1,384], index: 2, kind: input, shape index: {}]
  %s3 = inlined_call_operand.vmem [shape: f32[8,8,128], index: 3, kind: output, shape index: {0}]
  %s4 = inlined_call_operand.vmem [shape: f32[8,128], index: 4, kind: output, shape index: {1}]
  %5 = xla_tuple %s3, %s4
  %s6 = sld [smem:[#allocation0]]
  $region42: #{model_forward.6} parent=0
    _
  %s8 = ssub.s32 1, %s6
  %s9 = scalar_select 0, %s8, %s6
  $region1: #{model_forward.6} parent=0
    #allocation3 [shape = 'u8[196608]{0}', space=vmem, size = 0x30000, scoped, tag = 'input window, operand 1, single buffered']
    #allocation4 [shape = 's32[1]{0}', space=sflag, size = 0x4, scoped, tag = 'scoped memory for model_forward.6']
    %10 = vsyncpa [#allocation4], 0
    // Predicated region
    $region2: #{model_forward.6} parent=1 // pred_check
      _
    $region3: #{model_forward.6} parent=1 // pred_check_branch
      %12 = sbr.rel (0) target = $region5
    $region4: #{model_forward.6} parent=1 // pred_region
      _
    $region5: #{model_forward.6} parent=1 // pred_fallthru
      _
    // Predicated region
    $region6: #{model_forward.6} parent=1 // pred_check
      _
    $region7: #{model_forward.6} parent=1 // pred_check_branch
      %14 = sbr.rel (0) target = $region9
    $region8: #{model_forward.6} parent=1 // pred_region
      %16 = vsyncadd [#allocation4], 0
      %s17 = sshll.u32 %s1, 4
      %s18 = int_to_ptr.hbm [resolvable:$true] %s17
      %s19 = sshll.u32 [#allocation3], 4
      %s20 = int_to_ptr.vmem [resolvable:$true] %s19
      %25 = dma.hbm_to_vmem [thread:$0]  %s18, 6144, %s20, [#allocation4], 384, 384, 24
    $region9: #{model_forward.6} parent=1 // pred_fallthru
      _
    // Predicated region
    $region10: #{model_forward.6} parent=1 // pred_check
      _
    $region11: #{model_forward.6} parent=1 // pred_check_branch
      %27 = sbr.rel (0) target = $region13
    $region12: #{model_forward.6} parent=1 // pred_region
      _
    $region13: #{model_forward.6} parent=1 // pred_fallthru
      _
    // Predicated region
    $region14: #{model_forward.6} parent=1 // pred_check
      _
    $region15: #{model_forward.6} parent=1 // pred_check_branch
      %29 = sbr.rel (0) target = $region17
    $region16: #{model_forward.6} parent=1 // pred_region
      %31 = dma.done [#allocation4], 6144
    $region17: #{model_forward.6} parent=1 // pred_fallthru
      _
    %p32 = scmp.eq.s32.totalorder 0, 0
    // Predicated region
    $region18: #{model_forward.6} parent=1 // pred_check
      %p33 = pneg %p32
    $region19: #{model_forward.6} parent=1 // pred_check_branch
      %35 = sbr.rel (%p33) target = $region21
    $region20: #{model_forward.6} parent=1 // pred_region
      %36 = vst [vmem:[#allocation2] sm:$0xff] 0.0
    $region21: #{model_forward.6} parent=1 // pred_fallthru
      _
    %v37 = vld [vmem:[#allocation3] sm:$0xff]
    %v38 = vld [vmem:[#allocation3 + $0x8] sm:$0xff]
    %v39 = vld [vmem:[#allocation3 + $0x10] sm:$0xff]
    %v40 = vld [vmem:[#allocation3 + $0x18] sm:$0xff]
    %v41 = vld [vmem:[#allocation3 + $0x20] sm:$0xff]
    %v42 = vld [vmem:[#allocation3 + $0x28] sm:$0xff]
    %v43 = vld [vmem:[#allocation3 + $0x30] sm:$0xff]
    %v44 = vld [vmem:[#allocation3 + $0x38] sm:$0xff]
    %v45 = vld [vmem:[#allocation3 + $0x40] sm:$0xff]
    %v46 = vld [vmem:[#allocation3 + $0x48] sm:$0xff]
    %v47 = vld [vmem:[#allocation3 + $0x50] sm:$0xff]
    %v48 = vld [vmem:[#allocation3 + $0x58] sm:$0xff]
    %v49 = vld [vmem:[#allocation3 + $0x60] sm:$0xff]
    %v50 = vld [vmem:[#allocation3 + $0x68] sm:$0xff]
    %v51 = vld [vmem:[#allocation3 + $0x70] sm:$0xff]
    %v52 = vld [vmem:[#allocation3 + $0x78] sm:$0xff]
    %v53 = vld [vmem:[#allocation3 + $0x80] sm:$0xff]
    %v54 = vld [vmem:[#allocation3 + $0x88] sm:$0xff]
    %v55 = vld [vmem:[#allocation3 + $0x90] sm:$0xff]
    %v56 = vld [vmem:[#allocation3 + $0x98] sm:$0xff]
    %v57 = vld [vmem:[#allocation3 + $0xa0] sm:$0xff]
    %v58 = vld [vmem:[#allocation3 + $0xa8] sm:$0xff]
    %v59 = vld [vmem:[#allocation3 + $0xb0] sm:$0xff]
    %v60 = vld [vmem:[#allocation3 + $0xb8] sm:$0xff]
    %v61 = vld [vmem:[#allocation3 + $0xc0] sm:$0xff]
    %v62 = vld [vmem:[#allocation3 + $0xc8] sm:$0xff]
    %v63 = vld [vmem:[#allocation3 + $0xd0] sm:$0xff]
    %v64 = vld [vmem:[#allocation3 + $0xd8] sm:$0xff]
    %v65 = vld [vmem:[#allocation3 + $0xe0] sm:$0xff]
    %v66 = vld [vmem:[#allocation3 + $0xe8] sm:$0xff]
    %v67 = vld [vmem:[#allocation3 + $0xf0] sm:$0xff]
    %v68 = vld [vmem:[#allocation3 + $0xf8] sm:$0xff]
    %v69 = vld [vmem:[#allocation3 + $0x100] sm:$0xff]
    %v70 = vld [vmem:[#allocation3 + $0x108] sm:$0xff]
    %v71 = vld [vmem:[#allocation3 + $0x110] sm:$0xff]
    %v72 = vld [vmem:[#allocation3 + $0x118] sm:$0xff]
    %v73 = vld [vmem:[#allocation3 + $0x120] sm:$0xff]
    %v74 = vld [vmem:[#allocation3 + $0x128] sm:$0xff]
    %v75 = vld [vmem:[#allocation3 + $0x130] sm:$0xff]
    %v76 = vld [vmem:[#allocation3 + $0x138] sm:$0xff]
    %v77 = vld [vmem:[#allocation3 + $0x140] sm:$0xff]
    %v78 = vld [vmem:[#allocation3 + $0x148] sm:$0xff]
    %v79 = vld [vmem:[#allocation3 + $0x150] sm:$0xff]
    %v80 = vld [vmem:[#allocation3 + $0x158] sm:$0xff]
    %v81 = vld [vmem:[#allocation3 + $0x160] sm:$0xff]
    %v82 = vld [vmem:[#allocation3 + $0x168] sm:$0xff]
    %v83 = vld [vmem:[#allocation3 + $0x170] sm:$0xff]
    %v84 = vld [vmem:[#allocation3 + $0x178] sm:$0xff]
    %v85 = vld [vmem:[%s2] sm:$0x7]
    %v86 = vld [vmem:[#allocation2] sm:$0xff]
    %v87 = vld [vmem:[%s0] sm:$0xff]
    %v88 = vld [vmem:[%s0 + $0x8] sm:$0xff]
    %v89 = vld [vmem:[%s0 + $0x10] sm:$0xff]
    %v91 = vperm.slane %v85, 0
    %v92 = vperm.slane %v85, 1
    %v93 = vperm.slane %v85, 2
    %97 = vmatpush.msra.mxu0 %v82
    %98 = vmatpush.msra.mxu0 %v79
    %99 = vmatpush.msra.mxu0 %v76
    %100 = vmatpush.msra.mxu0 %v73
    %101 = vmatpush.msra.mxu0 %v70
    %102 = vmatpush.msra.mxu0 %v67
    %103 = vmatpush.msra.mxu0 %v64
    %104 = vmatpush.msra.mxu0 %v61
    %105 = vmatpush.msra.mxu0 %v58
    %106 = vmatpush.msra.mxu0 %v55
    %107 = vmatpush.msra.mxu0 %v52
    %108 = vmatpush.msra.mxu0 %v49
    %109 = vmatpush.msra.mxu0 %v46
    %110 = vmatpush.msra.mxu0 %v43
    %111 = vmatpush.msra.mxu0 %v40
    %112 = vmatpush.msra.mxu0 %v37
    %113 = vmatmul.f32.gmra.mxu0 %v86
    %v114 = vpop.f32.mrf.mxu0
    %v115 = vadd.f32 %v91, %v114
    %116 = vdwg.mxu0
    %117 = vmatpush.msra.mxu0 %v83
    %118 = vmatpush.msra.mxu0 %v80
    %119 = vmatpush.msra.mxu0 %v77
    %120 = vmatpush.msra.mxu0 %v74
    %121 = vmatpush.msra.mxu0 %v71
    %122 = vmatpush.msra.mxu0 %v68
    %123 = vmatpush.msra.mxu0 %v65
    %124 = vmatpush.msra.mxu0 %v62
    %125 = vmatpush.msra.mxu0 %v59
    %126 = vmatpush.msra.mxu0 %v56
    %127 = vmatpush.msra.mxu0 %v53
    %128 = vmatpush.msra.mxu0 %v50
    %129 = vmatpush.msra.mxu0 %v47
    %130 = vmatpush.msra.mxu0 %v44
    %131 = vmatpush.msra.mxu0 %v41
    %132 = vmatpush.msra.mxu0 %v38
    %133 = vmatmul.f32.gmra.mxu0 %v86
    %v134 = vpop.f32.mrf.mxu0
    %v135 = vadd.f32 %v92, %v134
    %136 = vdwg.mxu0
    %137 = vmatpush.msra.mxu0 %v84
    %138 = vmatpush.msra.mxu0 %v81
    %139 = vmatpush.msra.mxu0 %v78
    %140 = vmatpush.msra.mxu0 %v75
    %141 = vmatpush.msra.mxu0 %v72
    %142 = vmatpush.msra.mxu0 %v69
    %143 = vmatpush.msra.mxu0 %v66
    %144 = vmatpush.msra.mxu0 %v63
    %145 = vmatpush.msra.mxu0 %v60
    %146 = vmatpush.msra.mxu0 %v57
    %147 = vmatpush.msra.mxu0 %v54
    %148 = vmatpush.msra.mxu0 %v51
    %149 = vmatpush.msra.mxu0 %v48
    %150 = vmatpush.msra.mxu0 %v45
    %151 = vmatpush.msra.mxu0 %v42
    %152 = vmatpush.msra.mxu0 %v39
    %153 = vmatmul.f32.gmra.mxu0 %v86
    %v154 = vpop.f32.mrf.mxu0
    %v155 = vadd.f32 %v93, %v154
    %156 = vdwg.mxu0
    %v157 = vadd.f32 %v87, %v115
    %v158 = vxor.u32 %v157, 2147483648
    %v159 = vmul.f32 %v158, 1.442695
    %v160 = vpow.pop %v159
    %v161 = vadd.f32 %v160, 1.0
    %v162 = vrcp.pop %v161
    %v163 = vmul.f32 %v161, %v162
    %v164 = vsub.f32 1.0, %v163
    %v165 = vmul.f32 %v162, %v164
    %v166 = vadd.f32 %v162, %v165
    %vm167 = vweird.f32 %v161
    %vm168 = vweird.f32 %v162
    %vm169 = vmor %vm167, %vm168
    %v170 = vsel %vm169, %v162, %v166
    %v171 = vand.u32 2147483647, %v161
    %vm172 = vcmp.eq.f32.partialorder %v171, 8.507059e+37
    %v173 = vand.u32 %v161, 2147483648
    %v174 = vor.u32 1.1754944e-38, %v173
    %v175 = vsel %vm172, %v174, %v170
    %v176 = vmul.f32 1.0, %v175
    %v177 = vadd.f32 %v88, %v135
    %v178 = vxor.u32 %v177, 2147483648
    %v179 = vmul.f32 %v178, 1.442695
    %v180 = vpow.pop %v179
    %v181 = vadd.f32 %v180, 1.0
    %v182 = vrcp.pop %v181
    %v183 = vmul.f32 %v181, %v182
    %v184 = vsub.f32 1.0, %v183
    %v185 = vmul.f32 %v182, %v184
    %v186 = vadd.f32 %v182, %v185
    %vm187 = vweird.f32 %v181
    %vm188 = vweird.f32 %v182
    %vm189 = vmor %vm187, %vm188
    %v190 = vsel %vm189, %v182, %v186
    %v191 = vand.u32 2147483647, %v181
    %vm192 = vcmp.eq.f32.partialorder %v191, 8.507059e+37
    %v193 = vand.u32 %v181, 2147483648
    %v194 = vor.u32 1.1754944e-38, %v193
    %v195 = vsel %vm192, %v194, %v190
    %v196 = vmul.f32 1.0, %v195
    %v197 = vmul.f32 %v176, %v155
    %v198 = vadd.f32 %v89, %v197
    %v199 = vtanh.pop %v198
    %v200 = vsub.f32 1.0, %v196
    %v201 = vmul.f32 %v200, %v199
    %v202 = vmul.f32 %v196, %v86
    %v203 = vadd.f32 %v201, %v202
    %204 = vst [vmem:[%s3] sm:$0xff] %v203
    %s205 = scalar_lea.vmem %s0, 24
    %v206 = vld [vmem:[%s205] sm:$0xff]
    %v207 = vld [vmem:[%s205 + $0x8] sm:$0xff]
    %v208 = vld [vmem:[%s205 + $0x10] sm:$0xff]
    %209 = vmatpush.msra.mxu0 %v82
    %210 = vmatpush.msra.mxu0 %v79
    %211 = vmatpush.msra.mxu0 %v76
    %212 = vmatpush.msra.mxu0 %v73
    %213 = vmatpush.msra.mxu0 %v70
    %214 = vmatpush.msra.mxu0 %v67
    %215 = vmatpush.msra.mxu0 %v64
    %216 = vmatpush.msra.mxu0 %v61
    %217 = vmatpush.msra.mxu0 %v58
    %218 = vmatpush.msra.mxu0 %v55
    %219 = vmatpush.msra.mxu0 %v52
    %220 = vmatpush.msra.mxu0 %v49
    %221 = vmatpush.msra.mxu0 %v46
    %222 = vmatpush.msra.mxu0 %v43
    %223 = vmatpush.msra.mxu0 %v40
    %224 = vmatpush.msra.mxu0 %v37
    %225 = vmatmul.f32.gmra.mxu0 %v203
    %v226 = vpop.f32.mrf.mxu0
    %v227 = vadd.f32 %v91, %v226
    %228 = vdwg.mxu0
    %229 = vmatpush.msra.mxu0 %v83
    %230 = vmatpush.msra.mxu0 %v80
    %231 = vmatpush.msra.mxu0 %v77
    %232 = vmatpush.msra.mxu0 %v74
    %233 = vmatpush.msra.mxu0 %v71
    %234 = vmatpush.msra.mxu0 %v68
    %235 = vmatpush.msra.mxu0 %v65
    %236 = vmatpush.msra.mxu0 %v62
    %237 = vmatpush.msra.mxu0 %v59
    %238 = vmatpush.msra.mxu0 %v56
    %239 = vmatpush.msra.mxu0 %v53
    %240 = vmatpush.msra.mxu0 %v50
    %241 = vmatpush.msra.mxu0 %v47
    %242 = vmatpush.msra.mxu0 %v44
    %243 = vmatpush.msra.mxu0 %v41
    %244 = vmatpush.msra.mxu0 %v38
    %245 = vmatmul.f32.gmra.mxu0 %v203
    %v246 = vpop.f32.mrf.mxu0
    %v247 = vadd.f32 %v92, %v246
    %248 = vdwg.mxu0
    %249 = vmatpush.msra.mxu0 %v84
    %250 = vmatpush.msra.mxu0 %v81
    %251 = vmatpush.msra.mxu0 %v78
    %252 = vmatpush.msra.mxu0 %v75
    %253 = vmatpush.msra.mxu0 %v72
    %254 = vmatpush.msra.mxu0 %v69
    %255 = vmatpush.msra.mxu0 %v66
    %256 = vmatpush.msra.mxu0 %v63
    %257 = vmatpush.msra.mxu0 %v60
    %258 = vmatpush.msra.mxu0 %v57
    %259 = vmatpush.msra.mxu0 %v54
    %260 = vmatpush.msra.mxu0 %v51
    %261 = vmatpush.msra.mxu0 %v48
    %262 = vmatpush.msra.mxu0 %v45
    %263 = vmatpush.msra.mxu0 %v42
    %264 = vmatpush.msra.mxu0 %v39
    %265 = vmatmul.f32.gmra.mxu0 %v203
    %v266 = vpop.f32.mrf.mxu0
    %v267 = vadd.f32 %v93, %v266
    %268 = vdwg.mxu0
    %v269 = vadd.f32 %v206, %v227
    %v270 = vxor.u32 %v269, 2147483648
    %v271 = vmul.f32 %v270, 1.442695
    %v272 = vpow.pop %v271
    %v273 = vadd.f32 %v272, 1.0
    %v274 = vrcp.pop %v273
    %v275 = vmul.f32 %v273, %v274
    %v276 = vsub.f32 1.0, %v275
    %v277 = vmul.f32 %v274, %v276
    %v278 = vadd.f32 %v274, %v277
    %vm279 = vweird.f32 %v273
    %vm280 = vweird.f32 %v274
    %vm281 = vmor %vm279, %vm280
    %v282 = vsel %vm281, %v274, %v278
    %v283 = vand.u32 2147483647, %v273
    %vm284 = vcmp.eq.f32.partialorder %v283, 8.507059e+37
    %v285 = vand.u32 %v273, 2147483648
    %v286 = vor.u32 1.1754944e-38, %v285
    %v287 = vsel %vm284, %v286, %v282
    %v288 = vmul.f32 1.0, %v287
    %v289 = vadd.f32 %v207, %v247
    %v290 = vxor.u32 %v289, 2147483648
    %v291 = vmul.f32 %v290, 1.442695
    %v292 = vpow.pop %v291
    %v293 = vadd.f32 %v292, 1.0
    %v294 = vrcp.pop %v293
    %v295 = vmul.f32 %v293, %v294
    %v296 = vsub.f32 1.0, %v295
    %v297 = vmul.f32 %v294, %v296
    %v298 = vadd.f32 %v294, %v297
    %vm299 = vweird.f32 %v293
    %vm300 = vweird.f32 %v294
    %vm301 = vmor %vm299, %vm300
    %v302 = vsel %vm301, %v294, %v298
    %v303 = vand.u32 2147483647, %v293
    %vm304 = vcmp.eq.f32.partialorder %v303, 8.507059e+37
    %v305 = vand.u32 %v293, 2147483648
    %v306 = vor.u32 1.1754944e-38, %v305
    %v307 = vsel %vm304, %v306, %v302
    %v308 = vmul.f32 1.0, %v307
    %v309 = vmul.f32 %v288, %v267
    %v310 = vadd.f32 %v208, %v309
    %v311 = vtanh.pop %v310
    %v312 = vsub.f32 1.0, %v308
    %v313 = vmul.f32 %v312, %v311
    %v314 = vmul.f32 %v308, %v203
    %v315 = vadd.f32 %v313, %v314
    %s316 = scalar_lea.vmem %s3, 8
    %317 = vst [vmem:[%s316] sm:$0xff] %v315
    %s318 = scalar_lea.vmem %s0, 48
    %v319 = vld [vmem:[%s318] sm:$0xff]
    %v320 = vld [vmem:[%s318 + $0x8] sm:$0xff]
    %v321 = vld [vmem:[%s318 + $0x10] sm:$0xff]
    %322 = vmatpush.msra.mxu0 %v82
    %323 = vmatpush.msra.mxu0 %v79
    %324 = vmatpush.msra.mxu0 %v76
    %325 = vmatpush.msra.mxu0 %v73
    %326 = vmatpush.msra.mxu0 %v70
    %327 = vmatpush.msra.mxu0 %v67
    %328 = vmatpush.msra.mxu0 %v64
    %329 = vmatpush.msra.mxu0 %v61
    %330 = vmatpush.msra.mxu0 %v58
    %331 = vmatpush.msra.mxu0 %v55
    %332 = vmatpush.msra.mxu0 %v52
    %333 = vmatpush.msra.mxu0 %v49
    %334 = vmatpush.msra.mxu0 %v46
    %335 = vmatpush.msra.mxu0 %v43
    %336 = vmatpush.msra.mxu0 %v40
    %337 = vmatpush.msra.mxu0 %v37
    %338 = vmatmul.f32.gmra.mxu0 %v315
    %v339 = vpop.f32.mrf.mxu0
    %v340 = vadd.f32 %v91, %v339
    %341 = vdwg.mxu0
    %342 = vmatpush.msra.mxu0 %v83
    %343 = vmatpush.msra.mxu0 %v80
    %344 = vmatpush.msra.mxu0 %v77
    %345 = vmatpush.msra.mxu0 %v74
    %346 = vmatpush.msra.mxu0 %v71
    %347 = vmatpush.msra.mxu0 %v68
    %348 = vmatpush.msra.mxu0 %v65
    %349 = vmatpush.msra.mxu0 %v62
    %350 = vmatpush.msra.mxu0 %v59
    %351 = vmatpush.msra.mxu0 %v56
    %352 = vmatpush.msra.mxu0 %v53
    %353 = vmatpush.msra.mxu0 %v50
    %354 = vmatpush.msra.mxu0 %v47
    %355 = vmatpush.msra.mxu0 %v44
    %356 = vmatpush.msra.mxu0 %v41
    %357 = vmatpush.msra.mxu0 %v38
    %358 = vmatmul.f32.gmra.mxu0 %v315
    %v359 = vpop.f32.mrf.mxu0
    %v360 = vadd.f32 %v92, %v359
    %361 = vdwg.mxu0
    %362 = vmatpush.msra.mxu0 %v84
    %363 = vmatpush.msra.mxu0 %v81
    %364 = vmatpush.msra.mxu0 %v78
    %365 = vmatpush.msra.mxu0 %v75
    %366 = vmatpush.msra.mxu0 %v72
    %367 = vmatpush.msra.mxu0 %v69
    %368 = vmatpush.msra.mxu0 %v66
    %369 = vmatpush.msra.mxu0 %v63
    %370 = vmatpush.msra.mxu0 %v60
    %371 = vmatpush.msra.mxu0 %v57
    %372 = vmatpush.msra.mxu0 %v54
    %373 = vmatpush.msra.mxu0 %v51
    %374 = vmatpush.msra.mxu0 %v48
    %375 = vmatpush.msra.mxu0 %v45
    %376 = vmatpush.msra.mxu0 %v42
    %377 = vmatpush.msra.mxu0 %v39
    %378 = vmatmul.f32.gmra.mxu0 %v315
    %v379 = vpop.f32.mrf.mxu0
    %v380 = vadd.f32 %v93, %v379
    %381 = vdwg.mxu0
    %v382 = vadd.f32 %v319, %v340
    %v383 = vxor.u32 %v382, 2147483648
    %v384 = vmul.f32 %v383, 1.442695
    %v385 = vpow.pop %v384
    %v386 = vadd.f32 %v385, 1.0
    %v387 = vrcp.pop %v386
    %v388 = vmul.f32 %v386, %v387
    %v389 = vsub.f32 1.0, %v388
    %v390 = vmul.f32 %v387, %v389
    %v391 = vadd.f32 %v387, %v390
    %vm392 = vweird.f32 %v386
    %vm393 = vweird.f32 %v387
    %vm394 = vmor %vm392, %vm393
    %v395 = vsel %vm394, %v387, %v391
    %v396 = vand.u32 2147483647, %v386
    %vm397 = vcmp.eq.f32.partialorder %v396, 8.507059e+37
    %v398 = vand.u32 %v386, 2147483648
    %v399 = vor.u32 1.1754944e-38, %v398
    %v400 = vsel %vm397, %v399, %v395
    %v401 = vmul.f32 1.0, %v400
    %v402 = vadd.f32 %v320, %v360
    %v403 = vxor.u32 %v402, 2147483648
    %v404 = vmul.f32 %v403, 1.442695
    %v405 = vpow.pop %v404
    %v406 = vadd.f32 %v405, 1.0
    %v407 = vrcp.pop %v406
    %v408 = vmul.f32 %v406, %v407
    %v409 = vsub.f32 1.0, %v408
    %v410 = vmul.f32 %v407, %v409
    %v411 = vadd.f32 %v407, %v410
    %vm412 = vweird.f32 %v406
    %vm413 = vweird.f32 %v407
    %vm414 = vmor %vm412, %vm413
    %v415 = vsel %vm414, %v407, %v411
    %v416 = vand.u32 2147483647, %v406
    %vm417 = vcmp.eq.f32.partialorder %v416, 8.507059e+37
    %v418 = vand.u32 %v406, 2147483648
    %v419 = vor.u32 1.1754944e-38, %v418
    %v420 = vsel %vm417, %v419, %v415
    %v421 = vmul.f32 1.0, %v420
    %v422 = vmul.f32 %v401, %v380
    %v423 = vadd.f32 %v321, %v422
    %v424 = vtanh.pop %v423
    %v425 = vsub.f32 1.0, %v421
    %v426 = vmul.f32 %v425, %v424
    %v427 = vmul.f32 %v421, %v315
    %v428 = vadd.f32 %v426, %v427
    %s429 = scalar_lea.vmem %s3, 16
    %430 = vst [vmem:[%s429] sm:$0xff] %v428
    %s431 = scalar_lea.vmem %s0, 72
    %v432 = vld [vmem:[%s431] sm:$0xff]
    %v433 = vld [vmem:[%s431 + $0x8] sm:$0xff]
    %v434 = vld [vmem:[%s431 + $0x10] sm:$0xff]
    %435 = vmatpush.msra.mxu0 %v82
    %436 = vmatpush.msra.mxu0 %v79
    %437 = vmatpush.msra.mxu0 %v76
    %438 = vmatpush.msra.mxu0 %v73
    %439 = vmatpush.msra.mxu0 %v70
    %440 = vmatpush.msra.mxu0 %v67
    %441 = vmatpush.msra.mxu0 %v64
    %442 = vmatpush.msra.mxu0 %v61
    %443 = vmatpush.msra.mxu0 %v58
    %444 = vmatpush.msra.mxu0 %v55
    %445 = vmatpush.msra.mxu0 %v52
    %446 = vmatpush.msra.mxu0 %v49
    %447 = vmatpush.msra.mxu0 %v46
    %448 = vmatpush.msra.mxu0 %v43
    %449 = vmatpush.msra.mxu0 %v40
    %450 = vmatpush.msra.mxu0 %v37
    %451 = vmatmul.f32.gmra.mxu0 %v428
    %v452 = vpop.f32.mrf.mxu0
    %v453 = vadd.f32 %v91, %v452
    %454 = vdwg.mxu0
    %455 = vmatpush.msra.mxu0 %v83
    %456 = vmatpush.msra.mxu0 %v80
    %457 = vmatpush.msra.mxu0 %v77
    %458 = vmatpush.msra.mxu0 %v74
    %459 = vmatpush.msra.mxu0 %v71
    %460 = vmatpush.msra.mxu0 %v68
    %461 = vmatpush.msra.mxu0 %v65
    %462 = vmatpush.msra.mxu0 %v62
    %463 = vmatpush.msra.mxu0 %v59
    %464 = vmatpush.msra.mxu0 %v56
    %465 = vmatpush.msra.mxu0 %v53
    %466 = vmatpush.msra.mxu0 %v50
    %467 = vmatpush.msra.mxu0 %v47
    %468 = vmatpush.msra.mxu0 %v44
    %469 = vmatpush.msra.mxu0 %v41
    %470 = vmatpush.msra.mxu0 %v38
    %471 = vmatmul.f32.gmra.mxu0 %v428
    %v472 = vpop.f32.mrf.mxu0
    %v473 = vadd.f32 %v92, %v472
    %474 = vdwg.mxu0
    %475 = vmatpush.msra.mxu0 %v84
    %476 = vmatpush.msra.mxu0 %v81
    %477 = vmatpush.msra.mxu0 %v78
    %478 = vmatpush.msra.mxu0 %v75
    %479 = vmatpush.msra.mxu0 %v72
    %480 = vmatpush.msra.mxu0 %v69
    %481 = vmatpush.msra.mxu0 %v66
    %482 = vmatpush.msra.mxu0 %v63
    %483 = vmatpush.msra.mxu0 %v60
    %484 = vmatpush.msra.mxu0 %v57
    %485 = vmatpush.msra.mxu0 %v54
    %486 = vmatpush.msra.mxu0 %v51
    %487 = vmatpush.msra.mxu0 %v48
    %488 = vmatpush.msra.mxu0 %v45
    %489 = vmatpush.msra.mxu0 %v42
    %490 = vmatpush.msra.mxu0 %v39
    %491 = vmatmul.f32.gmra.mxu0 %v428
    %v492 = vpop.f32.mrf.mxu0
    %v493 = vadd.f32 %v93, %v492
    %494 = vdwg.mxu0
    %v495 = vadd.f32 %v432, %v453
    %v496 = vxor.u32 %v495, 2147483648
    %v497 = vmul.f32 %v496, 1.442695
    %v498 = vpow.pop %v497
    %v499 = vadd.f32 %v498, 1.0
    %v500 = vrcp.pop %v499
    %v501 = vmul.f32 %v499, %v500
    %v502 = vsub.f32 1.0, %v501
    %v503 = vmul.f32 %v500, %v502
    %v504 = vadd.f32 %v500, %v503
    %vm505 = vweird.f32 %v499
    %vm506 = vweird.f32 %v500
    %vm507 = vmor %vm505, %vm506
    %v508 = vsel %vm507, %v500, %v504
    %v509 = vand.u32 2147483647, %v499
    %vm510 = vcmp.eq.f32.partialorder %v509, 8.507059e+37
    %v511 = vand.u32 %v499, 2147483648
    %v512 = vor.u32 1.1754944e-38, %v511
    %v513 = vsel %vm510, %v512, %v508
    %v514 = vmul.f32 1.0, %v513
    %v515 = vadd.f32 %v433, %v473
    %v516 = vxor.u32 %v515, 2147483648
    %v517 = vmul.f32 %v516, 1.442695
    %v518 = vpow.pop %v517
    %v519 = vadd.f32 %v518, 1.0
    %v520 = vrcp.pop %v519
    %v521 = vmul.f32 %v519, %v520
    %v522 = vsub.f32 1.0, %v521
    %v523 = vmul.f32 %v520, %v522
    %v524 = vadd.f32 %v520, %v523
    %vm525 = vweird.f32 %v519
    %vm526 = vweird.f32 %v520
    %vm527 = vmor %vm525, %vm526
    %v528 = vsel %vm527, %v520, %v524
    %v529 = vand.u32 2147483647, %v519
    %vm530 = vcmp.eq.f32.partialorder %v529, 8.507059e+37
    %v531 = vand.u32 %v519, 2147483648
    %v532 = vor.u32 1.1754944e-38, %v531
    %v533 = vsel %vm530, %v532, %v528
    %v534 = vmul.f32 1.0, %v533
    %v535 = vmul.f32 %v514, %v493
    %v536 = vadd.f32 %v434, %v535
    %v537 = vtanh.pop %v536
    %v538 = vsub.f32 1.0, %v534
    %v539 = vmul.f32 %v538, %v537
    %v540 = vmul.f32 %v534, %v428
    %v541 = vadd.f32 %v539, %v540
    %s542 = scalar_lea.vmem %s3, 24
    %543 = vst [vmem:[%s542] sm:$0xff] %v541
    %s544 = scalar_lea.vmem %s0, 96
    %v545 = vld [vmem:[%s544] sm:$0xff]
    %v546 = vld [vmem:[%s544 + $0x8] sm:$0xff]
    %v547 = vld [vmem:[%s544 + $0x10] sm:$0xff]
    %548 = vmatpush.msra.mxu0 %v82
    %549 = vmatpush.msra.mxu0 %v79
    %550 = vmatpush.msra.mxu0 %v76
    %551 = vmatpush.msra.mxu0 %v73
    %552 = vmatpush.msra.mxu0 %v70
    %553 = vmatpush.msra.mxu0 %v67
    %554 = vmatpush.msra.mxu0 %v64
    %555 = vmatpush.msra.mxu0 %v61
    %556 = vmatpush.msra.mxu0 %v58
    %557 = vmatpush.msra.mxu0 %v55
    %558 = vmatpush.msra.mxu0 %v52
    %559 = vmatpush.msra.mxu0 %v49
    %560 = vmatpush.msra.mxu0 %v46
    %561 = vmatpush.msra.mxu0 %v43
    %562 = vmatpush.msra.mxu0 %v40
    %563 = vmatpush.msra.mxu0 %v37
    %564 = vmatmul.f32.gmra.mxu0 %v541
    %v565 = vpop.f32.mrf.mxu0
    %v566 = vadd.f32 %v91, %v565
    %567 = vdwg.mxu0
    %568 = vmatpush.msra.mxu0 %v83
    %569 = vmatpush.msra.mxu0 %v80
    %570 = vmatpush.msra.mxu0 %v77
    %571 = vmatpush.msra.mxu0 %v74
    %572 = vmatpush.msra.mxu0 %v71
    %573 = vmatpush.msra.mxu0 %v68
    %574 = vmatpush.msra.mxu0 %v65
    %575 = vmatpush.msra.mxu0 %v62
    %576 = vmatpush.msra.mxu0 %v59
    %577 = vmatpush.msra.mxu0 %v56
    %578 = vmatpush.msra.mxu0 %v53
    %579 = vmatpush.msra.mxu0 %v50
    %580 = vmatpush.msra.mxu0 %v47
    %581 = vmatpush.msra.mxu0 %v44
    %582 = vmatpush.msra.mxu0 %v41
    %583 = vmatpush.msra.mxu0 %v38
    %584 = vmatmul.f32.gmra.mxu0 %v541
    %v585 = vpop.f32.mrf.mxu0
    %v586 = vadd.f32 %v92, %v585
    %587 = vdwg.mxu0
    %588 = vmatpush.msra.mxu0 %v84
    %589 = vmatpush.msra.mxu0 %v81
    %590 = vmatpush.msra.mxu0 %v78
    %591 = vmatpush.msra.mxu0 %v75
    %592 = vmatpush.msra.mxu0 %v72
    %593 = vmatpush.msra.mxu0 %v69
    %594 = vmatpush.msra.mxu0 %v66
    %595 = vmatpush.msra.mxu0 %v63
    %596 = vmatpush.msra.mxu0 %v60
    %597 = vmatpush.msra.mxu0 %v57
    %598 = vmatpush.msra.mxu0 %v54
    %599 = vmatpush.msra.mxu0 %v51
    %600 = vmatpush.msra.mxu0 %v48
    %601 = vmatpush.msra.mxu0 %v45
    %602 = vmatpush.msra.mxu0 %v42
    %603 = vmatpush.msra.mxu0 %v39
    %604 = vmatmul.f32.gmra.mxu0 %v541
    %v605 = vpop.f32.mrf.mxu0
    %v606 = vadd.f32 %v93, %v605
    %607 = vdwg.mxu0
    %v608 = vadd.f32 %v545, %v566
    %v609 = vxor.u32 %v608, 2147483648
    %v610 = vmul.f32 %v609, 1.442695
    %v611 = vpow.pop %v610
    %v612 = vadd.f32 %v611, 1.0
    %v613 = vrcp.pop %v612
    %v614 = vmul.f32 %v612, %v613
    %v615 = vsub.f32 1.0, %v614
    %v616 = vmul.f32 %v613, %v615
    %v617 = vadd.f32 %v613, %v616
    %vm618 = vweird.f32 %v612
    %vm619 = vweird.f32 %v613
    %vm620 = vmor %vm618, %vm619
    %v621 = vsel %vm620, %v613, %v617
    %v622 = vand.u32 2147483647, %v612
    %vm623 = vcmp.eq.f32.partialorder %v622, 8.507059e+37
    %v624 = vand.u32 %v612, 2147483648
    %v625 = vor.u32 1.1754944e-38, %v624
    %v626 = vsel %vm623, %v625, %v621
    %v627 = vmul.f32 1.0, %v626
    %v628 = vadd.f32 %v546, %v586
    %v629 = vxor.u32 %v628, 2147483648
    %v630 = vmul.f32 %v629, 1.442695
    %v631 = vpow.pop %v630
    %v632 = vadd.f32 %v631, 1.0
    %v633 = vrcp.pop %v632
    %v634 = vmul.f32 %v632, %v633
    %v635 = vsub.f32 1.0, %v634
    %v636 = vmul.f32 %v633, %v635
    %v637 = vadd.f32 %v633, %v636
    %vm638 = vweird.f32 %v632
    %vm639 = vweird.f32 %v633
    %vm640 = vmor %vm638, %vm639
    %v641 = vsel %vm640, %v633, %v637
    %v642 = vand.u32 2147483647, %v632
    %vm643 = vcmp.eq.f32.partialorder %v642, 8.507059e+37
    %v644 = vand.u32 %v632, 2147483648
    %v645 = vor.u32 1.1754944e-38, %v644
    %v646 = vsel %vm643, %v645, %v641
    %v647 = vmul.f32 1.0, %v646
    %v648 = vmul.f32 %v627, %v606
    %v649 = vadd.f32 %v547, %v648
    %v650 = vtanh.pop %v649
    %v651 = vsub.f32 1.0, %v647
    %v652 = vmul.f32 %v651, %v650
    %v653 = vmul.f32 %v647, %v541
    %v654 = vadd.f32 %v652, %v653
    %s655 = scalar_lea.vmem %s3, 32
    %656 = vst [vmem:[%s655] sm:$0xff] %v654
    %s657 = scalar_lea.vmem %s0, 120
    %v658 = vld [vmem:[%s657] sm:$0xff]
    %v659 = vld [vmem:[%s657 + $0x8] sm:$0xff]
    %v660 = vld [vmem:[%s657 + $0x10] sm:$0xff]
    %661 = vmatpush.msra.mxu0 %v82
    %662 = vmatpush.msra.mxu0 %v79
    %663 = vmatpush.msra.mxu0 %v76
    %664 = vmatpush.msra.mxu0 %v73
    %665 = vmatpush.msra.mxu0 %v70
    %666 = vmatpush.msra.mxu0 %v67
    %667 = vmatpush.msra.mxu0 %v64
    %668 = vmatpush.msra.mxu0 %v61
    %669 = vmatpush.msra.mxu0 %v58
    %670 = vmatpush.msra.mxu0 %v55
    %671 = vmatpush.msra.mxu0 %v52
    %672 = vmatpush.msra.mxu0 %v49
    %673 = vmatpush.msra.mxu0 %v46
    %674 = vmatpush.msra.mxu0 %v43
    %675 = vmatpush.msra.mxu0 %v40
    %676 = vmatpush.msra.mxu0 %v37
    %677 = vmatmul.f32.gmra.mxu0 %v654
    %v678 = vpop.f32.mrf.mxu0
    %v679 = vadd.f32 %v91, %v678
    %680 = vdwg.mxu0
    %681 = vmatpush.msra.mxu0 %v83
    %682 = vmatpush.msra.mxu0 %v80
    %683 = vmatpush.msra.mxu0 %v77
    %684 = vmatpush.msra.mxu0 %v74
    %685 = vmatpush.msra.mxu0 %v71
    %686 = vmatpush.msra.mxu0 %v68
    %687 = vmatpush.msra.mxu0 %v65
    %688 = vmatpush.msra.mxu0 %v62
    %689 = vmatpush.msra.mxu0 %v59
    %690 = vmatpush.msra.mxu0 %v56
    %691 = vmatpush.msra.mxu0 %v53
    %692 = vmatpush.msra.mxu0 %v50
    %693 = vmatpush.msra.mxu0 %v47
    %694 = vmatpush.msra.mxu0 %v44
    %695 = vmatpush.msra.mxu0 %v41
    %696 = vmatpush.msra.mxu0 %v38
    %697 = vmatmul.f32.gmra.mxu0 %v654
    %v698 = vpop.f32.mrf.mxu0
    %v699 = vadd.f32 %v92, %v698
    %700 = vdwg.mxu0
    %701 = vmatpush.msra.mxu0 %v84
    %702 = vmatpush.msra.mxu0 %v81
    %703 = vmatpush.msra.mxu0 %v78
    %704 = vmatpush.msra.mxu0 %v75
    %705 = vmatpush.msra.mxu0 %v72
    %706 = vmatpush.msra.mxu0 %v69
    %707 = vmatpush.msra.mxu0 %v66
    %708 = vmatpush.msra.mxu0 %v63
    %709 = vmatpush.msra.mxu0 %v60
    %710 = vmatpush.msra.mxu0 %v57
    %711 = vmatpush.msra.mxu0 %v54
    %712 = vmatpush.msra.mxu0 %v51
    %713 = vmatpush.msra.mxu0 %v48
    %714 = vmatpush.msra.mxu0 %v45
    %715 = vmatpush.msra.mxu0 %v42
    %716 = vmatpush.msra.mxu0 %v39
    %717 = vmatmul.f32.gmra.mxu0 %v654
    %v718 = vpop.f32.mrf.mxu0
    %v719 = vadd.f32 %v93, %v718
    %720 = vdwg.mxu0
    %v721 = vadd.f32 %v658, %v679
    %v722 = vxor.u32 %v721, 2147483648
    %v723 = vmul.f32 %v722, 1.442695
    %v724 = vpow.pop %v723
    %v725 = vadd.f32 %v724, 1.0
    %v726 = vrcp.pop %v725
    %v727 = vmul.f32 %v725, %v726
    %v728 = vsub.f32 1.0, %v727
    %v729 = vmul.f32 %v726, %v728
    %v730 = vadd.f32 %v726, %v729
    %vm731 = vweird.f32 %v725
    %vm732 = vweird.f32 %v726
    %vm733 = vmor %vm731, %vm732
    %v734 = vsel %vm733, %v726, %v730
    %v735 = vand.u32 2147483647, %v725
    %vm736 = vcmp.eq.f32.partialorder %v735, 8.507059e+37
    %v737 = vand.u32 %v725, 2147483648
    %v738 = vor.u32 1.1754944e-38, %v737
    %v739 = vsel %vm736, %v738, %v734
    %v740 = vmul.f32 1.0, %v739
    %v741 = vadd.f32 %v659, %v699
    %v742 = vxor.u32 %v741, 2147483648
    %v743 = vmul.f32 %v742, 1.442695
    %v744 = vpow.pop %v743
    %v745 = vadd.f32 %v744, 1.0
    %v746 = vrcp.pop %v745
    %v747 = vmul.f32 %v745, %v746
    %v748 = vsub.f32 1.0, %v747
    %v749 = vmul.f32 %v746, %v748
    %v750 = vadd.f32 %v746, %v749
    %vm751 = vweird.f32 %v745
    %vm752 = vweird.f32 %v746
    %vm753 = vmor %vm751, %vm752
    %v754 = vsel %vm753, %v746, %v750
    %v755 = vand.u32 2147483647, %v745
    %vm756 = vcmp.eq.f32.partialorder %v755, 8.507059e+37
    %v757 = vand.u32 %v745, 2147483648
    %v758 = vor.u32 1.1754944e-38, %v757
    %v759 = vsel %vm756, %v758, %v754
    %v760 = vmul.f32 1.0, %v759
    %v761 = vmul.f32 %v740, %v719
    %v762 = vadd.f32 %v660, %v761
    %v763 = vtanh.pop %v762
    %v764 = vsub.f32 1.0, %v760
    %v765 = vmul.f32 %v764, %v763
    %v766 = vmul.f32 %v760, %v654
    %v767 = vadd.f32 %v765, %v766
    %s768 = scalar_lea.vmem %s3, 40
    %769 = vst [vmem:[%s768] sm:$0xff] %v767
    %s770 = scalar_lea.vmem %s0, 144
    %v771 = vld [vmem:[%s770] sm:$0xff]
    %v772 = vld [vmem:[%s770 + $0x8] sm:$0xff]
    %v773 = vld [vmem:[%s770 + $0x10] sm:$0xff]
    %774 = vmatpush.msra.mxu0 %v82
    %775 = vmatpush.msra.mxu0 %v79
    %776 = vmatpush.msra.mxu0 %v76
    %777 = vmatpush.msra.mxu0 %v73
    %778 = vmatpush.msra.mxu0 %v70
    %779 = vmatpush.msra.mxu0 %v67
    %780 = vmatpush.msra.mxu0 %v64
    %781 = vmatpush.msra.mxu0 %v61
    %782 = vmatpush.msra.mxu0 %v58
    %783 = vmatpush.msra.mxu0 %v55
    %784 = vmatpush.msra.mxu0 %v52
    %785 = vmatpush.msra.mxu0 %v49
    %786 = vmatpush.msra.mxu0 %v46
    %787 = vmatpush.msra.mxu0 %v43
    %788 = vmatpush.msra.mxu0 %v40
    %789 = vmatpush.msra.mxu0 %v37
    %790 = vmatmul.f32.gmra.mxu0 %v767
    %v791 = vpop.f32.mrf.mxu0
    %v792 = vadd.f32 %v91, %v791
    %793 = vdwg.mxu0
    %794 = vmatpush.msra.mxu0 %v83
    %795 = vmatpush.msra.mxu0 %v80
    %796 = vmatpush.msra.mxu0 %v77
    %797 = vmatpush.msra.mxu0 %v74
    %798 = vmatpush.msra.mxu0 %v71
    %799 = vmatpush.msra.mxu0 %v68
    %800 = vmatpush.msra.mxu0 %v65
    %801 = vmatpush.msra.mxu0 %v62
    %802 = vmatpush.msra.mxu0 %v59
    %803 = vmatpush.msra.mxu0 %v56
    %804 = vmatpush.msra.mxu0 %v53
    %805 = vmatpush.msra.mxu0 %v50
    %806 = vmatpush.msra.mxu0 %v47
    %807 = vmatpush.msra.mxu0 %v44
    %808 = vmatpush.msra.mxu0 %v41
    %809 = vmatpush.msra.mxu0 %v38
    %810 = vmatmul.f32.gmra.mxu0 %v767
    %v811 = vpop.f32.mrf.mxu0
    %v812 = vadd.f32 %v92, %v811
    %813 = vdwg.mxu0
    %814 = vmatpush.msra.mxu0 %v84
    %815 = vmatpush.msra.mxu0 %v81
    %816 = vmatpush.msra.mxu0 %v78
    %817 = vmatpush.msra.mxu0 %v75
    %818 = vmatpush.msra.mxu0 %v72
    %819 = vmatpush.msra.mxu0 %v69
    %820 = vmatpush.msra.mxu0 %v66
    %821 = vmatpush.msra.mxu0 %v63
    %822 = vmatpush.msra.mxu0 %v60
    %823 = vmatpush.msra.mxu0 %v57
    %824 = vmatpush.msra.mxu0 %v54
    %825 = vmatpush.msra.mxu0 %v51
    %826 = vmatpush.msra.mxu0 %v48
    %827 = vmatpush.msra.mxu0 %v45
    %828 = vmatpush.msra.mxu0 %v42
    %829 = vmatpush.msra.mxu0 %v39
    %830 = vmatmul.f32.gmra.mxu0 %v767
    %v831 = vpop.f32.mrf.mxu0
    %v832 = vadd.f32 %v93, %v831
    %833 = vdwg.mxu0
    %v834 = vadd.f32 %v771, %v792
    %v835 = vxor.u32 %v834, 2147483648
    %v836 = vmul.f32 %v835, 1.442695
    %v837 = vpow.pop %v836
    %v838 = vadd.f32 %v837, 1.0
    %v839 = vrcp.pop %v838
    %v840 = vmul.f32 %v838, %v839
    %v841 = vsub.f32 1.0, %v840
    %v842 = vmul.f32 %v839, %v841
    %v843 = vadd.f32 %v839, %v842
    %vm844 = vweird.f32 %v838
    %vm845 = vweird.f32 %v839
    %vm846 = vmor %vm844, %vm845
    %v847 = vsel %vm846, %v839, %v843
    %v848 = vand.u32 2147483647, %v838
    %vm849 = vcmp.eq.f32.partialorder %v848, 8.507059e+37
    %v850 = vand.u32 %v838, 2147483648
    %v851 = vor.u32 1.1754944e-38, %v850
    %v852 = vsel %vm849, %v851, %v847
    %v853 = vmul.f32 1.0, %v852
    %v854 = vadd.f32 %v772, %v812
    %v855 = vxor.u32 %v854, 2147483648
    %v856 = vmul.f32 %v855, 1.442695
    %v857 = vpow.pop %v856
    %v858 = vadd.f32 %v857, 1.0
    %v859 = vrcp.pop %v858
    %v860 = vmul.f32 %v858, %v859
    %v861 = vsub.f32 1.0, %v860
    %v862 = vmul.f32 %v859, %v861
    %v863 = vadd.f32 %v859, %v862
    %vm864 = vweird.f32 %v858
    %vm865 = vweird.f32 %v859
    %vm866 = vmor %vm864, %vm865
    %v867 = vsel %vm866, %v859, %v863
    %v868 = vand.u32 2147483647, %v858
    %vm869 = vcmp.eq.f32.partialorder %v868, 8.507059e+37
    %v870 = vand.u32 %v858, 2147483648
    %v871 = vor.u32 1.1754944e-38, %v870
    %v872 = vsel %vm869, %v871, %v867
    %v873 = vmul.f32 1.0, %v872
    %v874 = vmul.f32 %v853, %v832
    %v875 = vadd.f32 %v773, %v874
    %v876 = vtanh.pop %v875
    %v877 = vsub.f32 1.0, %v873
    %v878 = vmul.f32 %v877, %v876
    %v879 = vmul.f32 %v873, %v767
    %v880 = vadd.f32 %v878, %v879
    %s881 = scalar_lea.vmem %s3, 48
    %882 = vst [vmem:[%s881] sm:$0xff] %v880
    %s883 = scalar_lea.vmem %s0, 168
    %v884 = vld [vmem:[%s883] sm:$0xff]
    %v885 = vld [vmem:[%s883 + $0x8] sm:$0xff]
    %v886 = vld [vmem:[%s883 + $0x10] sm:$0xff]
    %887 = vmatpush.msra.mxu0 %v82
    %888 = vmatpush.msra.mxu0 %v79
    %889 = vmatpush.msra.mxu0 %v76
    %890 = vmatpush.msra.mxu0 %v73
    %891 = vmatpush.msra.mxu0 %v70
    %892 = vmatpush.msra.mxu0 %v67
    %893 = vmatpush.msra.mxu0 %v64
    %894 = vmatpush.msra.mxu0 %v61
    %895 = vmatpush.msra.mxu0 %v58
    %896 = vmatpush.msra.mxu0 %v55
    %897 = vmatpush.msra.mxu0 %v52
    %898 = vmatpush.msra.mxu0 %v49
    %899 = vmatpush.msra.mxu0 %v46
    %900 = vmatpush.msra.mxu0 %v43
    %901 = vmatpush.msra.mxu0 %v40
    %902 = vmatpush.msra.mxu0 %v37
    %903 = vmatmul.f32.gmra.mxu0 %v880
    %v904 = vpop.f32.mrf.mxu0
    %v905 = vadd.f32 %v91, %v904
    %906 = vdwg.mxu0
    %907 = vmatpush.msra.mxu0 %v83
    %908 = vmatpush.msra.mxu0 %v80
    %909 = vmatpush.msra.mxu0 %v77
    %910 = vmatpush.msra.mxu0 %v74
    %911 = vmatpush.msra.mxu0 %v71
    %912 = vmatpush.msra.mxu0 %v68
    %913 = vmatpush.msra.mxu0 %v65
    %914 = vmatpush.msra.mxu0 %v62
    %915 = vmatpush.msra.mxu0 %v59
    %916 = vmatpush.msra.mxu0 %v56
    %917 = vmatpush.msra.mxu0 %v53
    %918 = vmatpush.msra.mxu0 %v50
    %919 = vmatpush.msra.mxu0 %v47
    %920 = vmatpush.msra.mxu0 %v44
    %921 = vmatpush.msra.mxu0 %v41
    %922 = vmatpush.msra.mxu0 %v38
    %923 = vmatmul.f32.gmra.mxu0 %v880
    %v924 = vpop.f32.mrf.mxu0
    %v925 = vadd.f32 %v92, %v924
    %926 = vdwg.mxu0
    %927 = vmatpush.msra.mxu0 %v84
    %928 = vmatpush.msra.mxu0 %v81
    %929 = vmatpush.msra.mxu0 %v78
    %930 = vmatpush.msra.mxu0 %v75
    %931 = vmatpush.msra.mxu0 %v72
    %932 = vmatpush.msra.mxu0 %v69
    %933 = vmatpush.msra.mxu0 %v66
    %934 = vmatpush.msra.mxu0 %v63
    %935 = vmatpush.msra.mxu0 %v60
    %936 = vmatpush.msra.mxu0 %v57
    %937 = vmatpush.msra.mxu0 %v54
    %938 = vmatpush.msra.mxu0 %v51
    %939 = vmatpush.msra.mxu0 %v48
    %940 = vmatpush.msra.mxu0 %v45
    %941 = vmatpush.msra.mxu0 %v42
    %942 = vmatpush.msra.mxu0 %v39
    %943 = vmatmul.f32.gmra.mxu0 %v880
    %v944 = vpop.f32.mrf.mxu0
    %v945 = vadd.f32 %v93, %v944
    %946 = vdwg.mxu0
    %v947 = vadd.f32 %v884, %v905
    %v948 = vxor.u32 %v947, 2147483648
    %v949 = vmul.f32 %v948, 1.442695
    %v950 = vpow.pop %v949
    %v951 = vadd.f32 %v950, 1.0
    %v952 = vrcp.pop %v951
    %v953 = vmul.f32 %v951, %v952
    %v954 = vsub.f32 1.0, %v953
    %v955 = vmul.f32 %v952, %v954
    %v956 = vadd.f32 %v952, %v955
    %vm957 = vweird.f32 %v951
    %vm958 = vweird.f32 %v952
    %vm959 = vmor %vm957, %vm958
    %v960 = vsel %vm959, %v952, %v956
    %v961 = vand.u32 2147483647, %v951
    %vm962 = vcmp.eq.f32.partialorder %v961, 8.507059e+37
    %v963 = vand.u32 %v951, 2147483648
    %v964 = vor.u32 1.1754944e-38, %v963
    %v965 = vsel %vm962, %v964, %v960
    %v966 = vmul.f32 1.0, %v965
    %v967 = vadd.f32 %v885, %v925
    %v968 = vxor.u32 %v967, 2147483648
    %v969 = vmul.f32 %v968, 1.442695
    %v970 = vpow.pop %v969
    %v971 = vadd.f32 %v970, 1.0
    %v972 = vrcp.pop %v971
    %v973 = vmul.f32 %v971, %v972
    %v974 = vsub.f32 1.0, %v973
    %v975 = vmul.f32 %v972, %v974
    %v976 = vadd.f32 %v972, %v975
    %vm977 = vweird.f32 %v971
    %vm978 = vweird.f32 %v972
    %vm979 = vmor %vm977, %vm978
    %v980 = vsel %vm979, %v972, %v976
    %v981 = vand.u32 2147483647, %v971
    %vm982 = vcmp.eq.f32.partialorder %v981, 8.507059e+37
    %v983 = vand.u32 %v971, 2147483648
    %v984 = vor.u32 1.1754944e-38, %v983
    %v985 = vsel %vm982, %v984, %v980
    %v986 = vmul.f32 1.0, %v985
    %v987 = vmul.f32 %v966, %v945
    %v988 = vadd.f32 %v886, %v987
    %v989 = vtanh.pop %v988
    %v990 = vsub.f32 1.0, %v986
    %v991 = vmul.f32 %v990, %v989
    %v992 = vmul.f32 %v986, %v880
    %v993 = vadd.f32 %v991, %v992
    %s994 = scalar_lea.vmem %s3, 56
    %995 = vst [vmem:[%s994] sm:$0xff] %v993
    %996 = vst [vmem:[#allocation2] sm:$0xff] %v993
    // Predicated region
    $region22: #{model_forward.6} parent=1 // pred_check
      %p997 = pneg %p32
    $region23: #{model_forward.6} parent=1 // pred_check_branch
      %999 = sbr.rel (%p997) target = $region25
    $region24: #{model_forward.6} parent=1 // pred_region
      %1000 = vst [vmem:[%s4] sm:$0xff] %v993
    $region25: #{model_forward.6} parent=1 // pred_fallthru
      _
    // Predicated region
    $region26: #{model_forward.6} parent=1 // pred_check
      _
    $region27: #{model_forward.6} parent=1 // pred_check_branch
      %1002 = sbr.rel (0) target = $region29
    $region28: #{model_forward.6} parent=1 // pred_region
      _
    $region29: #{model_forward.6} parent=1 // pred_fallthru
      _
    // Predicated region
    $region30: #{model_forward.6} parent=1 // pred_check
      _
    $region31: #{model_forward.6} parent=1 // pred_check_branch
      %1004 = sbr.rel (0) target = $region33
    $region32: #{model_forward.6} parent=1 // pred_region
      _
    $region33: #{model_forward.6} parent=1 // pred_fallthru
      _
    // Predicated region
    $region34: #{model_forward.6} parent=1 // pred_check
      _
    $region35: #{model_forward.6} parent=1 // pred_check_branch
      %1006 = sbr.rel (0) target = $region37
    $region36: #{model_forward.6} parent=1 // pred_region
      _
    $region37: #{model_forward.6} parent=1 // pred_fallthru
      _
    // Predicated region
    $region38: #{model_forward.6} parent=1 // pred_check
      _
    $region39: #{model_forward.6} parent=1 // pred_check_branch
      %1008 = sbr.rel (0) target = $region41
    $region40: #{model_forward.6} parent=1 // pred_region
      _
    $region41: #{model_forward.6} parent=1 // pred_fallthru
      _
    %1009 = vsyncpa [#allocation4], 1

</llo_original>
